<compile_context>
chip_gen: v6e
topology: v6e:2x2x1
jax: 0.10.0
libtpu: 0.0.40
codegen_flags: <defaults>
</compile_context>

<pallas_src>
import functools

import jax
import jax.numpy as jnp
import numpy as np
from jax.experimental import pallas as pl
from jax.experimental.pallas import tpu as pltpu


def _gru_cell(x, h_prev, wi_ref, wh_ref, bi_ref, bh_ref, act_dtype):
    """Single fused GRU step. Weights are (Hp, 3Hp), column blocks ordered r|z|n."""
    wi = wi_ref[...]
    wh = wh_ref[...]
    Hp = wi.shape[0]
    gi = jnp.dot(x.astype(wi.dtype), wi, preferred_element_type=jnp.float32) + bi_ref[...]
    gh = jnp.dot(h_prev.astype(wh.dtype), wh, preferred_element_type=jnp.float32) + bh_ref[...]
    r = jax.nn.sigmoid((gi[:, :Hp] + gh[:, :Hp]).astype(act_dtype)).astype(jnp.float32)
    z = jax.nn.sigmoid((gi[:, Hp:2 * Hp] + gh[:, Hp:2 * Hp]).astype(act_dtype)).astype(jnp.float32)
    n = jnp.tanh((gi[:, 2 * Hp:] + r * gh[:, 2 * Hp:]).astype(act_dtype)).astype(jnp.float32)
    return (1.0 - z) * n + z * h_prev


def encoder_step_kernel(
    act_dtype,       # static (bound with functools.partial)
    x_f_ref,         # (1, Bt, Hp)  embedded input at forward timestep t
    x_b_ref,         # (1, Bt, Hp)  embedded input at backward timestep S-1-t
    len_ref,         # (Bt, 1) int32 sequence lengths for this batch tile
    wi_f_ref, wh_f_ref, bi_f_ref, bh_f_ref,   # forward-direction GRU params
    wi_b_ref, wh_b_ref, bi_b_ref, bh_b_ref,   # backward-direction GRU params
    out_f_ref,       # out (1, Bt, Hp) forward hidden at t (zero past length)
    out_b_ref,       # out (1, Bt, Hp) backward hidden at S-1-t (zero past length)
    hid_ref,         # out (Bt, Hp)    final fwd+bwd hidden, written at t == S-1
    hf_scratch,      # VMEM (Bt, Hp) f32 forward hidden carry
    hb_scratch,      # VMEM (Bt, Hp) f32 backward hidden carry
):
    t = pl.program_id(1)
    S = pl.num_programs(1)

    @pl.when(t == 0)
    def _():
        hf_scratch[...] = jnp.zeros_like(hf_scratch)
        hb_scratch[...] = jnp.zeros_like(hb_scratch)

    lens = len_ref[...]                       # (Bt, 1) int32
    mask_f = lens > t                         # forward timestep t inside the sequence
    mask_b = lens > (S - 1 - t)               # backward timestep S-1-t inside the sequence

    # ---- forward direction, timestep t ----
    h_prev_f = hf_scratch[...]
    h_new_f = _gru_cell(x_f_ref[0], h_prev_f, wi_f_ref, wh_f_ref, bi_f_ref, bh_f_ref, act_dtype)
    h_new_f = jnp.where(mask_f, h_new_f, h_prev_f)     # packed: state frozen past length
    hf_scratch[...] = h_new_f
    out_f_ref[0] = jnp.where(mask_f, h_new_f, 0.0).astype(out_f_ref.dtype)

    # ---- backward direction, timestep S-1-t ----
    h_prev_b = hb_scratch[...]
    h_new_b = _gru_cell(x_b_ref[0], h_prev_b, wi_b_ref, wh_b_ref, bi_b_ref, bh_b_ref, act_dtype)
    h_new_b = jnp.where(mask_b, h_new_b, h_prev_b)     # stays at zero init until t = len-1
    hb_scratch[...] = h_new_b
    out_b_ref[0] = jnp.where(mask_b, h_new_b, 0.0).astype(out_b_ref.dtype)

    @pl.when(t == S - 1)
    def _():
        hid_ref[...] = (hf_scratch[...] + hb_scratch[...]).astype(hid_ref.dtype)


def _round_up(x, m):
    return (x + m - 1) // m * m


def _vmem_limit_bytes(frac=0.8):
    cap = 64 * 1024 * 1024
    try:
        info = pltpu.get_tpu_info()
        cap = int(getattr(info, "vmem_capacity_bytes", cap) or cap)
    except Exception:
        pass
    return int(min(cap * frac, 100 * 1024 * 1024))


def _pack_gru_dir(w_ih, w_hh, b_ih, b_hh, H, Hp, mm_dtype):
    """torch (3H,H)/(3H,) -> fused, transposed, zero-padded (Hp,3Hp)/(1,3Hp), cols r|z|n."""
    wi = np.zeros((Hp, 3 * Hp), np.float32)
    wh = np.zeros((Hp, 3 * Hp), np.float32)
    bi = np.zeros((1, 3 * Hp), np.float32)
    bh = np.zeros((1, 3 * Hp), np.float32)
    w_ih = np.asarray(w_ih, np.float32)
    w_hh = np.asarray(w_hh, np.float32)
    b_ih = np.asarray(b_ih, np.float32)
    b_hh = np.asarray(b_hh, np.float32)
    for g in range(3):
        wi[:H, g * Hp:g * Hp + H] = w_ih[g * H:(g + 1) * H, :].T
        wh[:H, g * Hp:g * Hp + H] = w_hh[g * H:(g + 1) * H, :].T
        bi[0, g * Hp:g * Hp + H] = b_ih[g * H:(g + 1) * H]
        bh[0, g * Hp:g * Hp + H] = b_hh[g * H:(g + 1) * H]
    return (jnp.asarray(wi, mm_dtype), jnp.asarray(wh, mm_dtype),
            jnp.asarray(bi, jnp.float32), jnp.asarray(bh, jnp.float32))


def encoder_forward(params, input_seqs, input_lengths,
                    matmul_dtype=jnp.float32, act_dtype=None,
                    out_dtype=jnp.float32, batch_block=None, lane_multiple=128):
    """EncoderRNN forward (eval mode). Returns (outputs (B,S,H), hidden (1,B,H))."""
    emb = params["emb"]
    S, B = input_seqs.shape
    H = emb.shape[1]
    act_dtype = act_dtype or jnp.float32

    # pad hidden dim to a lane multiple: lane-dense stores, non-ragged MXU tiles
    Hp = _round_up(H, lane_multiple)

    # optional batch tiling -> outer "parallel" grid axis
    if batch_block is None:
        Bt = B
        Bpad = B
    else:
        Bt = max(8, _round_up(batch_block, 8))
        Bpad = _round_up(B, Bt)
    n_btiles = Bpad // Bt

    # embedding lookup + eval-mode (identity) dropout, then pad batch & hidden dims
    x = jnp.take(jnp.asarray(emb, jnp.float32), input_seqs, axis=0)          # (S, B, H)
    x = jnp.pad(x, ((0, 0), (0, Bpad - B), (0, Hp - H))).astype(matmul_dtype)
    lens = jnp.pad(jnp.asarray(input_lengths, jnp.int32), (0, Bpad - B)).reshape(Bpad, 1)

    wi_f, wh_f, bi_f, bh_f = _pack_gru_dir(params["w_ih_f"], params["w_hh_f"],
                                           params["b_ih_f"], params["b_hh_f"],
                                           H, Hp, matmul_dtype)
    wi_b, wh_b, bi_b, bh_b = _pack_gru_dir(params["w_ih_b"], params["w_hh_b"],
                                           params["b_ih_b"], params["b_hh_b"],
                                           H, Hp, matmul_dtype)

    def fixed(shape):
        r = len(shape)
        return pl.BlockSpec(shape, lambda b, t, _r=r: (0,) * _r)

    in_specs = [
        pl.BlockSpec((1, Bt, Hp), lambda b, t: (t, b, 0)),           # x, forward step t
        pl.BlockSpec((1, Bt, Hp), lambda b, t: (S - 1 - t, b, 0)),   # x, backward step S-1-t
        pl.BlockSpec((Bt, 1), lambda b, t: (b, 0)),                  # lengths
        fixed((Hp, 3 * Hp)), fixed((Hp, 3 * Hp)), fixed((1, 3 * Hp)), fixed((1, 3 * Hp)),
        fixed((Hp, 3 * Hp)), fixed((Hp, 3 * Hp)), fixed((1, 3 * Hp)), fixed((1, 3 * Hp)),
    ]
    out_specs = [
        pl.BlockSpec((1, Bt, Hp), lambda b, t: (t, b, 0)),           # forward outputs
        pl.BlockSpec((1, Bt, Hp), lambda b, t: (S - 1 - t, b, 0)),   # backward outputs
        pl.BlockSpec((Bt, Hp), lambda b, t: (b, 0)),                 # final hidden (resident over t)
    ]
    out_shape = [
        jax.ShapeDtypeStruct((S, Bpad, Hp), out_dtype),
        jax.ShapeDtypeStruct((S, Bpad, Hp), out_dtype),
        jax.ShapeDtypeStruct((Bpad, Hp), out_dtype),
    ]

    out_f, out_b, hid = pl.pallas_call(
        functools.partial(encoder_step_kernel, act_dtype),
        out_shape=out_shape,
        grid_spec=pltpu.PrefetchScalarGridSpec(
            num_scalar_prefetch=0,
            grid=(n_btiles, S),                 # B tiles outer (parallel), time inner
            in_specs=in_specs,
            out_specs=out_specs,
            scratch_shapes=[pltpu.VMEM((Bt, Hp), jnp.float32),
                            pltpu.VMEM((Bt, Hp), jnp.float32)],
        ),
        compiler_params=pltpu.CompilerParams(
            dimension_semantics=("parallel", "arbitrary"),   # S carries the recurrences
            vmem_limit_bytes=_vmem_limit_bytes()),
    )(x, x, lens, wi_f, wh_f, bi_f, bh_f, wi_b, wh_b, bi_b, bh_b)

    # torch: outputs[:,:,:H] + outputs[:,:,H:]  and  hidden[0] + hidden[1]
    out_sum = out_f.astype(jnp.float32)[:, :B, :H] + out_b.astype(jnp.float32)[:, :B, :H]
    outputs = jnp.transpose(out_sum, (1, 0, 2))              # (B, S, H)
    hidden = hid.astype(jnp.float32)[:B, :H][None]           # (1, B, H)
    # TODO(synk): training-mode dropout, args['load_embedding'] file I/O, and
    # n_layers > 1 stacked GRUs are not implemented (TRADE uses eval/1-layer here).
    return outputs, hidden


def reference_forward(params, input_seqs, input_lengths):
    """Pure-JAX replica of the torch EncoderRNN forward (eval, packed-seq semantics)."""
    emb = jnp.asarray(params["emb"], jnp.float32)
    S, B = input_seqs.shape
    H = emb.shape[1]
    x = emb[input_seqs]                                      # (S, B, H)
    lens = jnp.asarray(input_lengths, jnp.int32)

    def cell(x_t, h, w_ih, w_hh, b_ih, b_hh):
        gi = x_t @ w_ih.T + b_ih
        gh = h @ w_hh.T + b_hh
        r = jax.nn.sigmoid(gi[:, :H] + gh[:, :H])
        z = jax.nn.sigmoid(gi[:, H:2 * H] + gh[:, H:2 * H])
        n = jnp.tanh(gi[:, 2 * H:] + r * gh[:, 2 * H:])
        return (1.0 - z) * n + z * h

    hf = jnp.zeros((B, H), jnp.float32)
    outs_f = []
    for t in range(S):
        h_new = cell(x[t], hf, params["w_ih_f"], params["w_hh_f"],
                     params["b_ih_f"], params["b_hh_f"])
        m = (lens > t)[:, None]
        hf = jnp.where(m, h_new, hf)
        outs_f.append(jnp.where(m, hf, 0.0))

    hb = jnp.zeros((B, H), jnp.float32)
    outs_b = [None] * S
    for t in range(S - 1, -1, -1):
        h_new = cell(x[t], hb, params["w_ih_b"], params["w_hh_b"],
                     params["b_ih_b"], params["b_hh_b"])
        m = (lens > t)[:, None]
        hb = jnp.where(m, h_new, hb)
        outs_b[t] = jnp.where(m, hb, 0.0)

    outputs = jnp.stack(outs_f, 0) + jnp.stack(outs_b, 0)    # (S, B, H)
    hidden = hf + hb                                         # (B, H)
    return jnp.transpose(outputs, (1, 0, 2)), hidden[None]   # (B,S,H), (1,B,H)


if __name__ == "__main__":
    V, H, S, B = 100, 32, 9, 16
    key = jax.random.PRNGKey(0)
    keys = jax.random.split(key, 10)
    params = {
        "emb":    jax.random.normal(keys[0], (V, H), jnp.float32) * 0.1,
        "w_ih_f": jax.random.normal(keys[1], (3 * H, H), jnp.float32) * 0.1,
        "w_hh_f": jax.random.normal(keys[2], (3 * H, H), jnp.float32) * 0.1,
        "b_ih_f": jax.random.normal(keys[3], (3 * H,), jnp.float32) * 0.1,
        "b_hh_f": jax.random.normal(keys[4], (3 * H,), jnp.float32) * 0.1,
        "w_ih_b": jax.random.normal(keys[5], (3 * H, H), jnp.float32) * 0.1,
        "w_hh_b": jax.random.normal(keys[6], (3 * H, H), jnp.float32) * 0.1,
        "b_ih_b": jax.random.normal(keys[7], (3 * H,), jnp.float32) * 0.1,
        "b_hh_b": jax.random.normal(keys[8], (3 * H,), jnp.float32) * 0.1,
    }
    input_seqs = jax.random.randint(keys[9], (S, B), 0, V, jnp.int32)   # (S, B), seq-first
    input_lengths = jnp.array([S, S - 1, S - 2, 3, 1, S, 5, 2,
                               S, 4, S - 3, 7, 6, 1, S, 8], jnp.int32)

    ref_out, ref_hid = reference_forward(params, input_seqs, input_lengths)

    # 1) precise config (f32 MXU operands / activations), two 8-row batch tiles
    out, hid = encoder_forward(params, input_seqs, input_lengths,
                               matmul_dtype=jnp.float32, act_dtype=jnp.float32,
                               out_dtype=jnp.float32, batch_block=8)
    jax.block_until_ready((out, hid))
    assert out.shape == (B, S, H) and hid.shape == (1, B, H)
    assert np.allclose(np.asarray(out), np.asarray(ref_out), atol=5e-4, rtol=5e-4)
    assert np.allclose(np.asarray(hid), np.asarray(ref_hid), atol=5e-4, rtol=5e-4)

    # 2) same precise config without batch tiling (single full-B tile)
    out1, hid1 = encoder_forward(params, input_seqs, input_lengths,
                                 matmul_dtype=jnp.float32, batch_block=None)
    jax.block_until_ready((out1, hid1))
    assert np.allclose(np.asarray(out1), np.asarray(ref_out), atol=5e-4, rtol=5e-4)
    assert np.allclose(np.asarray(hid1), np.asarray(ref_hid), atol=5e-4, rtol=5e-4)

    # 3) performance config: bf16 MXU operands + bf16 EUP activations (v6e/v7x),
    #    bf16 HBM writeback, f32 accumulation/recurrence inside the kernel.
    out_f, hid_f = encoder_forward(params, input_seqs, input_lengths,
                                   matmul_dtype=jnp.bfloat16, act_dtype=jnp.bfloat16,
                                   out_dtype=jnp.bfloat16, batch_block=8)
    jax.block_until_ready((out_f, hid_f))
    out_f32 = np.asarray(out_f.astype(jnp.float32))
    hid_f32 = np.asarray(hid_f.astype(jnp.float32))
    assert np.all(np.isfinite(out_f32)) and np.all(np.isfinite(hid_f32))
    assert np.allclose(out_f32, np.asarray(ref_out), atol=0.2)
    assert np.allclose(hid_f32, np.asarray(ref_hid), atol=0.2)

    print("KERNEL_OK")
</pallas_src>

<mosaic_0001>
module attributes {stable_mosaic.version = 11 : i64} {
  func.func @encoder_step_kernel(%arg0: i32, %arg1: i32, %arg2: memref<1x8x128xf32, #tpu.memory_space<vmem>>, %arg3: memref<1x8x128xf32, #tpu.memory_space<vmem>>, %arg4: memref<8x1xi32, #tpu.memory_space<vmem>>, %arg5: memref<128x384xf32, #tpu.memory_space<vmem>>, %arg6: memref<128x384xf32, #tpu.memory_space<vmem>>, %arg7: memref<1x384xf32, #tpu.memory_space<vmem>>, %arg8: memref<1x384xf32, #tpu.memory_space<vmem>>, %arg9: memref<128x384xf32, #tpu.memory_space<vmem>>, %arg10: memref<128x384xf32, #tpu.memory_space<vmem>>, %arg11: memref<1x384xf32, #tpu.memory_space<vmem>>, %arg12: memref<1x384xf32, #tpu.memory_space<vmem>>, %arg13: memref<1x8x128xf32, #tpu.memory_space<vmem>>, %arg14: memref<1x8x128xf32, #tpu.memory_space<vmem>>, %arg15: memref<8x128xf32, #tpu.memory_space<vmem>>, %arg16: memref<8x128xf32, #tpu.memory_space<vmem>>, %arg17: memref<8x128xf32, #tpu.memory_space<vmem>>) attributes {dimension_semantics = [#tpu.dimension_semantics<parallel>, #tpu.dimension_semantics<arbitrary>], iteration_bounds = array<i64: 2, 9>, scalar_prefetch = 0 : i64, scratch_operands = 2 : i64, tpu.core_type = #tpu.core_type<tc>, window_params = [{transform_indices = @transform_0, window_bounds = array<i64: 1, 8, 128>}, {transform_indices = @transform_1, window_bounds = array<i64: 1, 8, 128>}, {transform_indices = @transform_2, window_bounds = array<i64: 8, 1>}, {pipeline_mode = #tpu.pipeline_mode<synchronous>, transform_indices = @transform_3, window_bounds = array<i64: 128, 384>}, {pipeline_mode = #tpu.pipeline_mode<synchronous>, transform_indices = @transform_4, window_bounds = array<i64: 128, 384>}, {pipeline_mode = #tpu.pipeline_mode<synchronous>, transform_indices = @transform_5, window_bounds = array<i64: 1, 384>}, {pipeline_mode = #tpu.pipeline_mode<synchronous>, transform_indices = @transform_6, window_bounds = array<i64: 1, 384>}, {pipeline_mode = #tpu.pipeline_mode<synchronous>, transform_indices = @transform_7, window_bounds = array<i64: 128, 384>}, {pipeline_mode = #tpu.pipeline_mode<synchronous>, transform_indices = @transform_8, window_bounds = array<i64: 128, 384>}, {pipeline_mode = #tpu.pipeline_mode<synchronous>, transform_indices = @transform_9, window_bounds = array<i64: 1, 384>}, {pipeline_mode = #tpu.pipeline_mode<synchronous>, transform_indices = @transform_10, window_bounds = array<i64: 1, 384>}, {transform_indices = @transform_11, window_bounds = array<i64: 1, 8, 128>}, {transform_indices = @transform_12, window_bounds = array<i64: 1, 8, 128>}, {transform_indices = @transform_13, window_bounds = array<i64: 8, 128>}]} {
    %c0_i32 = arith.constant 0 : i32
    %0 = arith.cmpi eq, %arg1, %c0_i32 : i32
    %1 = arith.extui %0 : i1 to i32
    %c0_i32_0 = arith.constant 0 : i32
    %2 = arith.cmpi ne, %1, %c0_i32_0 : i32
    scf.if %2 {
      %cst_51 = arith.constant 0.000000e+00 : f32
      %112 = vector.broadcast %cst_51 : f32 to vector<8x128xf32>
      %c0_52 = arith.constant 0 : index
      %c0_53 = arith.constant 0 : index
      %113 = vector.load %arg16[%c0_52, %c0_53] : memref<8x128xf32, #tpu.memory_space<vmem>>, vector<8x128xf32>
      tpu.vector_store %arg16[%c0_52, %c0_53], %112 {strides = array<i32>} : memref<8x128xf32, #tpu.memory_space<vmem>>, vector<8x128xf32>,
      %cst_54 = arith.constant 0.000000e+00 : f32
      %114 = vector.broadcast %cst_54 : f32 to vector<8x128xf32>
      %c0_55 = arith.constant 0 : index
      %c0_56 = arith.constant 0 : index
      %115 = vector.load %arg17[%c0_55, %c0_56] : memref<8x128xf32, #tpu.memory_space<vmem>>, vector<8x128xf32>
      tpu.vector_store %arg17[%c0_55, %c0_56], %114 {strides = array<i32>} : memref<8x128xf32, #tpu.memory_space<vmem>>, vector<8x128xf32>,
    } else {
    }
    %c0 = arith.constant 0 : index
    %c0_1 = arith.constant 0 : index
    %3 = vector.load %arg4[%c0, %c0_1] : memref<8x1xi32, #tpu.memory_space<vmem>>, vector<8x1xi32>
    %4 = vector.broadcast %arg1 : i32 to vector<8x1xi32>
    %5 = arith.cmpi sgt, %3, %4 : vector<8x1xi32>
    %c8_i32 = arith.constant 8 : i32
    %6 = arith.subi %c8_i32, %arg1 : i32
    %7 = vector.broadcast %6 : i32 to vector<8x1xi32>
    %8 = arith.cmpi sgt, %3, %7 : vector<8x1xi32>
    %c0_2 = arith.constant 0 : index
    %c0_3 = arith.constant 0 : index
    %9 = vector.load %arg16[%c0_2, %c0_3] : memref<8x128xf32, #tpu.memory_space<vmem>>, vector<8x128xf32>
    %c0_4 = arith.constant 0 : index
    %c0_5 = arith.constant 0 : index
    %c0_6 = arith.constant 0 : index
    %10 = vector.load %arg2[%c0_4, %c0_5, %c0_6] : memref<1x8x128xf32, #tpu.memory_space<vmem>>, vector<1x8x128xf32>
    %11 = vector.shape_cast %10 : vector<1x8x128xf32> to vector<8x128xf32>
    %c0_7 = arith.constant 0 : index
    %c0_8 = arith.constant 0 : index
    %12 = vector.load %arg5[%c0_7, %c0_8] : memref<128x384xf32, #tpu.memory_space<vmem>>, vector<128x384xf32>
    %c0_9 = arith.constant 0 : index
    %c0_10 = arith.constant 0 : index
    %13 = vector.load %arg6[%c0_9, %c0_10] : memref<128x384xf32, #tpu.memory_space<vmem>>, vector<128x384xf32>
    %cst = arith.constant dense<0.000000e+00> : vector<8x384xf32>
    %14 = tpu.matmul %11, %12, %cst {dimension_numbers = #tpu.dot_dimension_numbers<[1], [0], [0], [1], [0, 0, 1, 1], [], []>} : vector<8x128xf32>, vector<128x384xf32>, vector<8x384xf32> -> vector<8x384xf32>
    %c0_11 = arith.constant 0 : index
    %c0_12 = arith.constant 0 : index
    %15 = vector.load %arg7[%c0_11, %c0_12] : memref<1x384xf32, #tpu.memory_space<vmem>>, vector<1x384xf32>
    %16 = vector.broadcast %15 : vector<1x384xf32> to vector<8x384xf32>
    %17 = arith.addf %14, %16 : vector<8x384xf32>
    %cst_13 = arith.constant dense<0.000000e+00> : vector<8x384xf32>
    %18 = tpu.matmul %9, %13, %cst_13 {dimension_numbers = #tpu.dot_dimension_numbers<[1], [0], [0], [1], [0, 0, 1, 1], [], []>} : vector<8x128xf32>, vector<128x384xf32>, vector<8x384xf32> -> vector<8x384xf32>
    %c0_14 = arith.constant 0 : index
    %c0_15 = arith.constant 0 : index
    %19 = vector.load %arg8[%c0_14, %c0_15] : memref<1x384xf32, #tpu.memory_space<vmem>>, vector<1x384xf32>
    %20 = vector.broadcast %19 : vector<1x384xf32> to vector<8x384xf32>
    %21 = arith.addf %18, %20 : vector<8x384xf32>
    %22 = vector.extract_strided_slice %17 {offsets = [0, 0], sizes = [8, 128], strides = [1, 1]} : vector<8x384xf32> to vector<8x128xf32>
    %23 = vector.extract_strided_slice %21 {offsets = [0, 0], sizes = [8, 128], strides = [1, 1]} : vector<8x384xf32> to vector<8x128xf32>
    %24 = arith.addf %22, %23 : vector<8x128xf32>
    %25 = arith.negf %24 : vector<8x128xf32>
    %26 = math.exp %25 : vector<8x128xf32>
    %cst_16 = arith.constant 1.000000e+00 : f32
    %27 = vector.broadcast %cst_16 : f32 to vector<8x128xf32>
    %28 = arith.addf %27, %26 : vector<8x128xf32>
    %29 = arith.divf %27, %28 : vector<8x128xf32>
    %30 = vector.extract_strided_slice %17 {offsets = [0, 128], sizes = [8, 128], strides = [1, 1]} : vector<8x384xf32> to vector<8x128xf32>
    %31 = vector.extract_strided_slice %21 {offsets = [0, 128], sizes = [8, 128], strides = [1, 1]} : vector<8x384xf32> to vector<8x128xf32>
    %32 = arith.addf %30, %31 : vector<8x128xf32>
    %33 = arith.negf %32 : vector<8x128xf32>
    %34 = math.exp %33 : vector<8x128xf32>
    %cst_17 = arith.constant 1.000000e+00 : f32
    %35 = vector.broadcast %cst_17 : f32 to vector<8x128xf32>
    %36 = arith.addf %35, %34 : vector<8x128xf32>
    %37 = arith.divf %35, %36 : vector<8x128xf32>
    %38 = vector.extract_strided_slice %17 {offsets = [0, 256], sizes = [8, 128], strides = [1, 1]} : vector<8x384xf32> to vector<8x128xf32>
    %39 = vector.extract_strided_slice %21 {offsets = [0, 256], sizes = [8, 128], strides = [1, 1]} : vector<8x384xf32> to vector<8x128xf32>
    %40 = arith.mulf %29, %39 : vector<8x128xf32>
    %41 = arith.addf %38, %40 : vector<8x128xf32>
    %42 = math.tanh %41 : vector<8x128xf32>
    %cst_18 = arith.constant 1.000000e+00 : f32
    %43 = vector.broadcast %cst_18 : f32 to vector<8x128xf32>
    %44 = arith.subf %43, %37 : vector<8x128xf32>
    %45 = arith.mulf %44, %42 : vector<8x128xf32>
    %46 = arith.mulf %37, %9 : vector<8x128xf32>
    %47 = arith.addf %45, %46 : vector<8x128xf32>
    %48 = vector.shape_cast %5 : vector<8x1xi1> to vector<8x1xi1>
    %49 = vector.broadcast %48 : vector<8x1xi1> to vector<8x128xi1>
    %50 = arith.select %49, %47, %9 : vector<8x128xi1>, vector<8x128xf32>
    %c0_19 = arith.constant 0 : index
    %c0_20 = arith.constant 0 : index
    %51 = vector.load %arg16[%c0_19, %c0_20] : memref<8x128xf32, #tpu.memory_space<vmem>>, vector<8x128xf32>
    tpu.vector_store %arg16[%c0_19, %c0_20], %50 {strides = array<i32>} : memref<8x128xf32, #tpu.memory_space<vmem>>, vector<8x128xf32>,
    %cst_21 = arith.constant 0.000000e+00 : f32
    %52 = vector.shape_cast %5 : vector<8x1xi1> to vector<8x1xi1>
    %53 = vector.broadcast %52 : vector<8x1xi1> to vector<8x128xi1>
    %54 = vector.broadcast %cst_21 : f32 to vector<8x128xf32>
    %55 = arith.select %53, %50, %54 : vector<8x128xi1>, vector<8x128xf32>
    %c0_22 = arith.constant 0 : index
    %c0_23 = arith.constant 0 : index
    %c0_24 = arith.constant 0 : index
    %56 = vector.load %arg13[%c0_22, %c0_23, %c0_24] : memref<1x8x128xf32, #tpu.memory_space<vmem>>, vector<1x8x128xf32>
    %57 = vector.shape_cast %56 : vector<1x8x128xf32> to vector<8x128xf32>
    %58 = vector.shape_cast %55 : vector<8x128xf32> to vector<1x8x128xf32>
    tpu.vector_store %arg13[%c0_22, %c0_23, %c0_24], %58 {strides = array<i32>} : memref<1x8x128xf32, #tpu.memory_space<vmem>>, vector<1x8x128xf32>,
    %c0_25 = arith.constant 0 : index
    %c0_26 = arith.constant 0 : index
    %59 = vector.load %arg17[%c0_25, %c0_26] : memref<8x128xf32, #tpu.memory_space<vmem>>, vector<8x128xf32>
    %c0_27 = arith.constant 0 : index
    %c0_28 = arith.constant 0 : index
    %c0_29 = arith.constant 0 : index
    %60 = vector.load %arg3[%c0_27, %c0_28, %c0_29] : memref<1x8x128xf32, #tpu.memory_space<vmem>>, vector<1x8x128xf32>
    %61 = vector.shape_cast %60 : vector<1x8x128xf32> to vector<8x128xf32>
    %c0_30 = arith.constant 0 : index
    %c0_31 = arith.constant 0 : index
    %62 = vector.load %arg9[%c0_30, %c0_31] : memref<128x384xf32, #tpu.memory_space<vmem>>, vector<128x384xf32>
    %c0_32 = arith.constant 0 : index
    %c0_33 = arith.constant 0 : index
    %63 = vector.load %arg10[%c0_32, %c0_33] : memref<128x384xf32, #tpu.memory_space<vmem>>, vector<128x384xf32>
    %cst_34 = arith.constant dense<0.000000e+00> : vector<8x384xf32>
    %64 = tpu.matmul %61, %62, %cst_34 {dimension_numbers = #tpu.dot_dimension_numbers<[1], [0], [0], [1], [0, 0, 1, 1], [], []>} : vector<8x128xf32>, vector<128x384xf32>, vector<8x384xf32> -> vector<8x384xf32>
    %c0_35 = arith.constant 0 : index
    %c0_36 = arith.constant 0 : index
    %65 = vector.load %arg11[%c0_35, %c0_36] : memref<1x384xf32, #tpu.memory_space<vmem>>, vector<1x384xf32>
    %66 = vector.broadcast %65 : vector<1x384xf32> to vector<8x384xf32>
    %67 = arith.addf %64, %66 : vector<8x384xf32>
    %cst_37 = arith.constant dense<0.000000e+00> : vector<8x384xf32>
    %68 = tpu.matmul %59, %63, %cst_37 {dimension_numbers = #tpu.dot_dimension_numbers<[1], [0], [0], [1], [0, 0, 1, 1], [], []>} : vector<8x128xf32>, vector<128x384xf32>, vector<8x384xf32> -> vector<8x384xf32>
    %c0_38 = arith.constant 0 : index
    %c0_39 = arith.constant 0 : index
    %69 = vector.load %arg12[%c0_38, %c0_39] : memref<1x384xf32, #tpu.memory_space<vmem>>, vector<1x384xf32>
    %70 = vector.broadcast %69 : vector<1x384xf32> to vector<8x384xf32>
    %71 = arith.addf %68, %70 : vector<8x384xf32>
    %72 = vector.extract_strided_slice %67 {offsets = [0, 0], sizes = [8, 128], strides = [1, 1]} : vector<8x384xf32> to vector<8x128xf32>
    %73 = vector.extract_strided_slice %71 {offsets = [0, 0], sizes = [8, 128], strides = [1, 1]} : vector<8x384xf32> to vector<8x128xf32>
    %74 = arith.addf %72, %73 : vector<8x128xf32>
    %75 = arith.negf %74 : vector<8x128xf32>
    %76 = math.exp %75 : vector<8x128xf32>
    %cst_40 = arith.constant 1.000000e+00 : f32
    %77 = vector.broadcast %cst_40 : f32 to vector<8x128xf32>
    %78 = arith.addf %77, %76 : vector<8x128xf32>
    %79 = arith.divf %77, %78 : vector<8x128xf32>
    %80 = vector.extract_strided_slice %67 {offsets = [0, 128], sizes = [8, 128], strides = [1, 1]} : vector<8x384xf32> to vector<8x128xf32>
    %81 = vector.extract_strided_slice %71 {offsets = [0, 128], sizes = [8, 128], strides = [1, 1]} : vector<8x384xf32> to vector<8x128xf32>
    %82 = arith.addf %80, %81 : vector<8x128xf32>
    %83 = arith.negf %82 : vector<8x128xf32>
    %84 = math.exp %83 : vector<8x128xf32>
    %cst_41 = arith.constant 1.000000e+00 : f32
    %85 = vector.broadcast %cst_41 : f32 to vector<8x128xf32>
    %86 = arith.addf %85, %84 : vector<8x128xf32>
    %87 = arith.divf %85, %86 : vector<8x128xf32>
    %88 = vector.extract_strided_slice %67 {offsets = [0, 256], sizes = [8, 128], strides = [1, 1]} : vector<8x384xf32> to vector<8x128xf32>
    %89 = vector.extract_strided_slice %71 {offsets = [0, 256], sizes = [8, 128], strides = [1, 1]} : vector<8x384xf32> to vector<8x128xf32>
    %90 = arith.mulf %79, %89 : vector<8x128xf32>
    %91 = arith.addf %88, %90 : vector<8x128xf32>
    %92 = math.tanh %91 : vector<8x128xf32>
    %cst_42 = arith.constant 1.000000e+00 : f32
    %93 = vector.broadcast %cst_42 : f32 to vector<8x128xf32>
    %94 = arith.subf %93, %87 : vector<8x128xf32>
    %95 = arith.mulf %94, %92 : vector<8x128xf32>
    %96 = arith.mulf %87, %59 : vector<8x128xf32>
    %97 = arith.addf %95, %96 : vector<8x128xf32>
    %98 = vector.shape_cast %8 : vector<8x1xi1> to vector<8x1xi1>
    %99 = vector.broadcast %98 : vector<8x1xi1> to vector<8x128xi1>
    %100 = arith.select %99, %97, %59 : vector<8x128xi1>, vector<8x128xf32>
    %c0_43 = arith.constant 0 : index
    %c0_44 = arith.constant 0 : index
    %101 = vector.load %arg17[%c0_43, %c0_44] : memref<8x128xf32, #tpu.memory_space<vmem>>, vector<8x128xf32>
    tpu.vector_store %arg17[%c0_43, %c0_44], %100 {strides = array<i32>} : memref<8x128xf32, #tpu.memory_space<vmem>>, vector<8x128xf32>,
    %cst_45 = arith.constant 0.000000e+00 : f32
    %102 = vector.shape_cast %8 : vector<8x1xi1> to vector<8x1xi1>
    %103 = vector.broadcast %102 : vector<8x1xi1> to vector<8x128xi1>
    %104 = vector.broadcast %cst_45 : f32 to vector<8x128xf32>
    %105 = arith.select %103, %100, %104 : vector<8x128xi1>, vector<8x128xf32>
    %c0_46 = arith.constant 0 : index
    %c0_47 = arith.constant 0 : index
    %c0_48 = arith.constant 0 : index
    %106 = vector.load %arg14[%c0_46, %c0_47, %c0_48] : memref<1x8x128xf32, #tpu.memory_space<vmem>>, vector<1x8x128xf32>
    %107 = vector.shape_cast %106 : vector<1x8x128xf32> to vector<8x128xf32>
    %108 = vector.shape_cast %105 : vector<8x128xf32> to vector<1x8x128xf32>
    tpu.vector_store %arg14[%c0_46, %c0_47, %c0_48], %108 {strides = array<i32>} : memref<1x8x128xf32, #tpu.memory_space<vmem>>, vector<1x8x128xf32>,
    %c8_i32_49 = arith.constant 8 : i32
    %109 = arith.cmpi eq, %arg1, %c8_i32_49 : i32
    %110 = arith.extui %109 : i1 to i32
    %c0_i32_50 = arith.constant 0 : i32
    %111 = arith.cmpi ne, %110, %c0_i32_50 : i32
    scf.if %111 {
      %c0_51 = arith.constant 0 : index
      %c0_52 = arith.constant 0 : index
      %112 = vector.load %arg16[%c0_51, %c0_52] : memref<8x128xf32, #tpu.memory_space<vmem>>, vector<8x128xf32>
      %c0_53 = arith.constant 0 : index
      %c0_54 = arith.constant 0 : index
      %113 = vector.load %arg17[%c0_53, %c0_54] : memref<8x128xf32, #tpu.memory_space<vmem>>, vector<8x128xf32>
      %114 = arith.addf %112, %113 : vector<8x128xf32>
      %c0_55 = arith.constant 0 : index
      %c0_56 = arith.constant 0 : index
      %115 = vector.load %arg15[%c0_55, %c0_56] : memref<8x128xf32, #tpu.memory_space<vmem>>, vector<8x128xf32>
      tpu.vector_store %arg15[%c0_55, %c0_56], %114 {strides = array<i32>} : memref<8x128xf32, #tpu.memory_space<vmem>>, vector<8x128xf32>,
    } else {
    }
    return
  }
  func.func @transform_0(%arg0: i32, %arg1: i32) -> (i32, i32, i32) {
    %c0_i32 = arith.constant 0 : i32
    %c0_i32_0 = arith.constant 0 : i32
    return %arg1, %arg0, %c0_i32 : i32, i32, i32
  }
  func.func @transform_1(%arg0: i32, %arg1: i32) -> (i32, i32, i32) {
    %c8_i32 = arith.constant 8 : i32
    %0 = arith.subi %c8_i32, %arg1 : i32
    %c0_i32 = arith.constant 0 : i32
    %c0_i32_0 = arith.constant 0 : i32
    return %0, %arg0, %c0_i32 : i32, i32, i32
  }
  func.func @transform_2(%arg0: i32, %arg1: i32) -> (i32, i32) {
    %c0_i32 = arith.constant 0 : i32
    %c0_i32_0 = arith.constant 0 : i32
    return %arg0, %c0_i32 : i32, i32
  }
  func.func @transform_3(%arg0: i32, %arg1: i32) -> (i32, i32) {
    %c0_i32 = arith.constant 0 : i32
    %c0_i32_0 = arith.constant 0 : i32
    %c0_i32_1 = arith.constant 0 : i32
    return %c0_i32, %c0_i32_0 : i32, i32
  }
  func.func @transform_4(%arg0: i32, %arg1: i32) -> (i32, i32) {
    %c0_i32 = arith.constant 0 : i32
    %c0_i32_0 = arith.constant 0 : i32
    %c0_i32_1 = arith.constant 0 : i32
    return %c0_i32, %c0_i32_0 : i32, i32
  }
  func.func @transform_5(%arg0: i32, %arg1: i32) -> (i32, i32) {
    %c0_i32 = arith.constant 0 : i32
    %c0_i32_0 = arith.constant 0 : i32
    %c0_i32_1 = arith.constant 0 : i32
    return %c0_i32, %c0_i32_0 : i32, i32
  }
  func.func @transform_6(%arg0: i32, %arg1: i32) -> (i32, i32) {
    %c0_i32 = arith.constant 0 : i32
    %c0_i32_0 = arith.constant 0 : i32
    %c0_i32_1 = arith.constant 0 : i32
    return %c0_i32, %c0_i32_0 : i32, i32
  }
  func.func @transform_7(%arg0: i32, %arg1: i32) -> (i32, i32) {
    %c0_i32 = arith.constant 0 : i32
    %c0_i32_0 = arith.constant 0 : i32
    %c0_i32_1 = arith.constant 0 : i32
    return %c0_i32, %c0_i32_0 : i32, i32
  }
  func.func @transform_8(%arg0: i32, %arg1: i32) -> (i32, i32) {
    %c0_i32 = arith.constant 0 : i32
    %c0_i32_0 = arith.constant 0 : i32
    %c0_i32_1 = arith.constant 0 : i32
    return %c0_i32, %c0_i32_0 : i32, i32
  }
  func.func @transform_9(%arg0: i32, %arg1: i32) -> (i32, i32) {
    %c0_i32 = arith.constant 0 : i32
    %c0_i32_0 = arith.constant 0 : i32
    %c0_i32_1 = arith.constant 0 : i32
    return %c0_i32, %c0_i32_0 : i32, i32
  }
  func.func @transform_10(%arg0: i32, %arg1: i32) -> (i32, i32) {
    %c0_i32 = arith.constant 0 : i32
    %c0_i32_0 = arith.constant 0 : i32
    %c0_i32_1 = arith.constant 0 : i32
    return %c0_i32, %c0_i32_0 : i32, i32
  }
  func.func @transform_11(%arg0: i32, %arg1: i32) -> (i32, i32, i32) {
    %c0_i32 = arith.constant 0 : i32
    %c0_i32_0 = arith.constant 0 : i32
    return %arg1, %arg0, %c0_i32 : i32, i32, i32
  }
  func.func @transform_12(%arg0: i32, %arg1: i32) -> (i32, i32, i32) {
    %c8_i32 = arith.constant 8 : i32
    %0 = arith.subi %c8_i32, %arg1 : i32
    %c0_i32 = arith.constant 0 : i32
    %c0_i32_0 = arith.constant 0 : i32
    return %0, %arg0, %c0_i32 : i32, i32, i32
  }
  func.func @transform_13(%arg0: i32, %arg1: i32) -> (i32, i32) {
    %c0_i32 = arith.constant 0 : i32
    %c0_i32_0 = arith.constant 0 : i32
    return %arg0, %c0_i32 : i32, i32
  }
}

</mosaic_0001>

<llo_original>
// kernel: tpu_custom_call.1
$region0: #{tpu_custom_call.1}
  #allocation0 [shape = 'u32[]', space=smem, size = 0x4, offset = 0x4, fixed_abs, tag = 'smem constant byte address 0x4 - core index']
  #allocation1 [shape = 'u32[144,128]{1,0:T(1,128)}', space=vmem, size = 0x12000, scoped, tag = 'internal scratch']
  #allocation2 [shape = 'f32[8,128]{1,0:T(8,128)}', space=vmem, size = 0x1000, scoped, tag = 'scratch operand']
  #allocation3 [shape = 'f32[8,128]{1,0:T(8,128)}', space=vmem, size = 0x1000, scoped, tag = 'scratch operand']
  %s0 = inlined_call_operand.hbm [shape: f32[9,16,128], index: 0, kind: input, shape index: {}]
  %s1 = inlined_call_operand.hbm [shape: f32[9,16,128], index: 1, kind: input, shape index: {}]
  %s2 = inlined_call_operand.vmem [shape: s32[16,1], index: 2, kind: input, shape index: {}]
  %s3 = inlined_call_operand.hbm [shape: f32[128,384], index: 3, kind: input, shape index: {}]
  %s4 = inlined_call_operand.hbm [shape: f32[128,384], index: 4, kind: input, shape index: {}]
  %s5 = inlined_call_operand.vmem [shape: f32[1,384], index: 5, kind: input, shape index: {}]
  %s6 = inlined_call_operand.vmem [shape: f32[1,384], index: 6, kind: input, shape index: {}]
  %s7 = inlined_call_operand.hbm [shape: f32[128,384], index: 7, kind: input, shape index: {}]
  %s8 = inlined_call_operand.hbm [shape: f32[128,384], index: 8, kind: input, shape index: {}]
  %s9 = inlined_call_operand.vmem [shape: f32[1,384], index: 9, kind: input, shape index: {}]
  %s10 = inlined_call_operand.vmem [shape: f32[1,384], index: 10, kind: input, shape index: {}]
  %s11 = inlined_call_operand.hbm [shape: f32[9,16,128], index: 11, kind: output, shape index: {0}]
  %s12 = inlined_call_operand.hbm [shape: f32[9,16,128], index: 12, kind: output, shape index: {1}]
  %s13 = inlined_call_operand.hbm [shape: f32[16,128], index: 13, kind: output, shape index: {2}]
  %14 = xla_tuple %s11, %s12, %s13
  %s15 = sld [smem:[#allocation0]]
  $region125: #{tpu_custom_call.1} parent=0
    _
  %s17 = ssub.s32 1, %s15
  %s18 = scalar_select 0, %s17, %s15
  $region1: #{tpu_custom_call.1} parent=0
    #allocation4 [shape = 'u8[8192]{0}', space=vmem, size = 0x2000, scoped, tag = 'input window, operand 0']
    #allocation5 [shape = 's32[2]{0}', space=sflag, size = 0x8, scoped, tag = 'scoped memory for tpu_custom_call.1']
    #allocation6 [shape = 's32[2]{0}', space=sflag, size = 0x8, scoped, tag = 'scoped memory for tpu_custom_call.1']
    #allocation7 [shape = 'u8[8192]{0}', space=vmem, size = 0x2000, scoped, tag = 'input window, operand 1']
    #allocation8 [shape = 's32[2]{0}', space=sflag, size = 0x8, scoped, tag = 'scoped memory for tpu_custom_call.1']
    #allocation9 [shape = 'u8[196608]{0}', space=vmem, size = 0x30000, scoped, tag = 'input window, operand 3, single buffered']
    #allocation10 [shape = 'u8[196608]{0}', space=vmem, size = 0x30000, scoped, tag = 'input window, operand 4, single buffered']
    #allocation11 [shape = 's32[1]{0}', space=sflag, size = 0x4, scoped, tag = 'scoped memory for tpu_custom_call.1']
    #allocation12 [shape = 'u8[196608]{0}', space=vmem, size = 0x30000, scoped, tag = 'input window, operand 7, single buffered']
    #allocation13 [shape = 'u8[196608]{0}', space=vmem, size = 0x30000, scoped, tag = 'input window, operand 8, single buffered']
    #allocation14 [shape = 's32[1]{0}', space=sflag, size = 0x4, scoped, tag = 'scoped memory for tpu_custom_call.1']
    #allocation15 [shape = 'u8[8192]{0}', space=vmem, size = 0x2000, scoped, tag = 'output window, operand 0']
    #allocation16 [shape = 'u8[8192]{0}', space=vmem, size = 0x2000, scoped, tag = 'output window, operand 1']
    #allocation17 [shape = 's32[2]{0}', space=sflag, size = 0x8, scoped, tag = 'scoped memory for tpu_custom_call.1']
    #allocation18 [shape = 'u8[8192]{0}', space=vmem, size = 0x2000, scoped, tag = 'output window, operand 2']
    %19 = vsyncpa [#allocation5], 0
    %s20 = scalar_lea.sflag [#allocation5], 1
    %21 = vsyncpa %s20, 0
    %22 = vsyncpa [#allocation8], 0
    %s23 = scalar_lea.sflag [#allocation8], 1
    %24 = vsyncpa %s23, 0
    %25 = vsyncpa [#allocation11], 0
    %26 = vsyncpa [#allocation14], 0
    %27 = vsyncpa [#allocation6], 0
    %s28 = scalar_lea.sflag [#allocation6], 1
    %29 = vsyncpa %s28, 0
    %30 = vsyncpa [#allocation17], 0
    %s31 = scalar_lea.sflag [#allocation17], 1
    %32 = vsyncpa %s31, 0
    loop: start=0, step=1, limit=20
    $region2: #{tpu_custom_call.1} parent=1 // loop_pre_header
      _
    $region3: #{tpu_custom_call.1} parent=1 // loop_header
      %s34 = sphi 0, %s38
      %p35 = scmp.ge.s32.totalorder %s34, 20
      %s41 = sphi 0, %s53
      %s42 = sphi 0, %s49
      %s43 = sphi 0, %s41
      %s44 = sphi 0, %s42
      %s45 = sphi 0, %s43
      %s46 = sphi 0, %s44
      %s58 = sphi 0, %s60
      %s61 = sphi 0, %s58
      %s62 = sphi 0, %s61
      %s78 = sphi 0, %s62
      %s88 = sphi 0, %s90
      %s91 = sphi 0, %s88
      %s92 = sphi 0, %s91
      %s108 = sphi 0, %s92
      %s114 = sphi 0, %s116
      %s117 = sphi 0, %s114
      %s118 = sphi 0, %s117
      %s134 = sphi 0, %s118
      %s138 = sphi 0, %s138
      %s140 = sphi 0, %s138
      %s141 = sphi 0, %s140
      %s155 = sphi 0, %s141
      %s159 = sphi 0, %s159
      %s161 = sphi 0, %s159
      %s162 = sphi 0, %s161
      %s176 = sphi 0, %s162
      %s180 = sphi 0, %s180
      %s182 = sphi 0, %s180
      %s183 = sphi 0, %s182
      %s197 = sphi 0, %s183
      %s201 = sphi 0, %s201
      %s203 = sphi 0, %s201
      %s204 = sphi 0, %s203
      %s218 = sphi 0, %s204
      %s222 = sphi 0, %s222
      %s224 = sphi 0, %s222
      %s225 = sphi 0, %s224
      %s239 = sphi 0, %s225
      %s243 = sphi 0, %s243
      %s245 = sphi 0, %s243
      %s246 = sphi 0, %s245
      %s260 = sphi 0, %s246
      %s264 = sphi 0, %s264
      %s266 = sphi 0, %s264
      %s267 = sphi 0, %s266
      %s281 = sphi 0, %s267
      %s285 = sphi 0, %s285
      %s287 = sphi 0, %s285
      %s288 = sphi 0, %s287
      %s302 = sphi 0, %s288
      %s310 = sphi 0, %s312
      %s313 = sphi 0, %s310
      %s314 = sphi 0, %s313
      %s330 = sphi 0, %s314
      %s340 = sphi 0, %s342
      %s343 = sphi 0, %s340
      %s344 = sphi 0, %s343
      %s360 = sphi 0, %s344
      %s366 = sphi 0, %s368
      %s369 = sphi 0, %s366
      %s370 = sphi 0, %s369
      %s386 = sphi 0, %s370
    $region4: #{tpu_custom_call.1} parent=1 // loop_header_branch
      %37 = sbr.rel (%p35) target = $region8
    $region5: #{tpu_custom_call.1} parent=1 // loop_body
      %s39 = ssub.s32 %s34, 1
      %s40 = ssub.s32 %s34, 2
      %s47 = sadd.s32 1, %s42
      %p48 = scmp.ge.s32.totalorder %s47, 9
      %s49 = scalar_select %p48, 0, %s47
      %s50 = sadd.s32 1, %s41
      %s51 = scalar_select %p48, %s50, %s41
      %p52 = scmp.ge.s32.totalorder %s51, 2
      %s53 = scalar_select %p52, 0, %s51
      %s54 = ssub.s32 %s42, %s49
      %s55 = ssub.s32 %s41, %s53
      %s56 = sor.u32 %s54, %s55
      %p57 = scmp.eq.s32.totalorder %s56, 0
      %s59 = sadd.s32 %s58, 1
      %s60 = scalar_select %p57, %s58, %s59
      %p63 = pneg %p57
      %p64 = scmp.eq.s32.totalorder %s34, 17
      %p65 = por %p63, %p64
      %p66 = scmp.ne.s32.totalorder %s58, %s61
      %p67 = scmp.eq.s32.totalorder %s34, 0
      %p68 = por %p66, %p67
      %p69 = scmp.ne.s32.totalorder %s58, %s61
      %p70 = scmp.eq.s32.totalorder %s39, 17
      %p71 = por %p69, %p70
      %p72 = scmp.ne.s32.totalorder %s61, %s62
      %p73 = scmp.eq.s32.totalorder %s39, 0
      %p74 = por %p72, %p73
      %p75 = scmp.ne.s32.totalorder %s61, %s62
      %p76 = scmp.eq.s32.totalorder %s40, 17
      %p77 = por %p75, %p76
      %p79 = scmp.ne.s32.totalorder %s62, %s78
      %p80 = scmp.eq.s32.totalorder %s40, 0
      %p81 = por %p79, %p80
      %s82 = ssub.s32 8, %s42
      %s83 = ssub.s32 8, %s49
      %s84 = ssub.s32 %s82, %s83
      %s85 = ssub.s32 %s41, %s53
      %s86 = sor.u32 %s84, %s85
      %p87 = scmp.eq.s32.totalorder %s86, 0
      %s89 = sadd.s32 %s88, 1
      %s90 = scalar_select %p87, %s88, %s89
      %p93 = pneg %p87
      %p94 = scmp.eq.s32.totalorder %s34, 17
      %p95 = por %p93, %p94
      %p96 = scmp.ne.s32.totalorder %s88, %s91
      %p97 = scmp.eq.s32.totalorder %s34, 0
      %p98 = por %p96, %p97
      %p99 = scmp.ne.s32.totalorder %s88, %s91
      %p100 = scmp.eq.s32.totalorder %s39, 17
      %p101 = por %p99, %p100
      %p102 = scmp.ne.s32.totalorder %s91, %s92
      %p103 = scmp.eq.s32.totalorder %s39, 0
      %p104 = por %p102, %p103
      %p105 = scmp.ne.s32.totalorder %s91, %s92
      %p106 = scmp.eq.s32.totalorder %s40, 17
      %p107 = por %p105, %p106
      %p109 = scmp.ne.s32.totalorder %s92, %s108
      %p110 = scmp.eq.s32.totalorder %s40, 0
      %p111 = por %p109, %p110
      %s112 = ssub.s32 %s41, %s53
      %p113 = scmp.eq.s32.totalorder %s112, 0
      %s115 = sadd.s32 %s114, 1
      %s116 = scalar_select %p113, %s114, %s115
      %p119 = pneg %p113
      %p120 = scmp.eq.s32.totalorder %s34, 17
      %p121 = por %p119, %p120
      %p122 = scmp.ne.s32.totalorder %s114, %s117
      %p123 = scmp.eq.s32.totalorder %s34, 0
      %p124 = por %p122, %p123
      %p125 = scmp.ne.s32.totalorder %s114, %s117
      %p126 = scmp.eq.s32.totalorder %s39, 17
      %p127 = por %p125, %p126
      %p128 = scmp.ne.s32.totalorder %s117, %s118
      %p129 = scmp.eq.s32.totalorder %s39, 0
      %p130 = por %p128, %p129
      %p131 = scmp.ne.s32.totalorder %s117, %s118
      %p132 = scmp.eq.s32.totalorder %s40, 17
      %p133 = por %p131, %p132
      %p135 = scmp.ne.s32.totalorder %s118, %s134
      %p136 = scmp.eq.s32.totalorder %s40, 0
      %p137 = por %p135, %p136
      %s139 = sadd.s32 %s138, 1
      %p142 = scmp.eq.s32.totalorder %s34, 17
      %p143 = scmp.ne.s32.totalorder %s138, %s140
      %p144 = scmp.eq.s32.totalorder %s34, 0
      %p145 = por %p143, %p144
      %p146 = scmp.ne.s32.totalorder %s138, %s140
      %p147 = scmp.eq.s32.totalorder %s39, 17
      %p148 = por %p146, %p147
      %p149 = scmp.ne.s32.totalorder %s140, %s141
      %p150 = scmp.eq.s32.totalorder %s39, 0
      %p151 = por %p149, %p150
      %p152 = scmp.ne.s32.totalorder %s140, %s141
      %p153 = scmp.eq.s32.totalorder %s40, 17
      %p154 = por %p152, %p153
      %p156 = scmp.ne.s32.totalorder %s141, %s155
      %p157 = scmp.eq.s32.totalorder %s40, 0
      %p158 = por %p156, %p157
      %s160 = sadd.s32 %s159, 1
      %p163 = scmp.eq.s32.totalorder %s34, 17
      %p164 = scmp.ne.s32.totalorder %s159, %s161
      %p165 = scmp.eq.s32.totalorder %s34, 0
      %p166 = por %p164, %p165
      %p167 = scmp.ne.s32.totalorder %s159, %s161
      %p168 = scmp.eq.s32.totalorder %s39, 17
      %p169 = por %p167, %p168
      %p170 = scmp.ne.s32.totalorder %s161, %s162
      %p171 = scmp.eq.s32.totalorder %s39, 0
      %p172 = por %p170, %p171
      %p173 = scmp.ne.s32.totalorder %s161, %s162
      %p174 = scmp.eq.s32.totalorder %s40, 17
      %p175 = por %p173, %p174
      %p177 = scmp.ne.s32.totalorder %s162, %s176
      %p178 = scmp.eq.s32.totalorder %s40, 0
      %p179 = por %p177, %p178
      %s181 = sadd.s32 %s180, 1
      %p184 = scmp.eq.s32.totalorder %s34, 17
      %p185 = scmp.ne.s32.totalorder %s180, %s182
      %p186 = scmp.eq.s32.totalorder %s34, 0
      %p187 = por %p185, %p186
      %p188 = scmp.ne.s32.totalorder %s180, %s182
      %p189 = scmp.eq.s32.totalorder %s39, 17
      %p190 = por %p188, %p189
      %p191 = scmp.ne.s32.totalorder %s182, %s183
      %p192 = scmp.eq.s32.totalorder %s39, 0
      %p193 = por %p191, %p192
      %p194 = scmp.ne.s32.totalorder %s182, %s183
      %p195 = scmp.eq.s32.totalorder %s40, 17
      %p196 = por %p194, %p195
      %p198 = scmp.ne.s32.totalorder %s183, %s197
      %p199 = scmp.eq.s32.totalorder %s40, 0
      %p200 = por %p198, %p199
      %s202 = sadd.s32 %s201, 1
      %p205 = scmp.eq.s32.totalorder %s34, 17
      %p206 = scmp.ne.s32.totalorder %s201, %s203
      %p207 = scmp.eq.s32.totalorder %s34, 0
      %p208 = por %p206, %p207
      %p209 = scmp.ne.s32.totalorder %s201, %s203
      %p210 = scmp.eq.s32.totalorder %s39, 17
      %p211 = por %p209, %p210
      %p212 = scmp.ne.s32.totalorder %s203, %s204
      %p213 = scmp.eq.s32.totalorder %s39, 0
      %p214 = por %p212, %p213
      %p215 = scmp.ne.s32.totalorder %s203, %s204
      %p216 = scmp.eq.s32.totalorder %s40, 17
      %p217 = por %p215, %p216
      %p219 = scmp.ne.s32.totalorder %s204, %s218
      %p220 = scmp.eq.s32.totalorder %s40, 0
      %p221 = por %p219, %p220
      %s223 = sadd.s32 %s222, 1
      %p226 = scmp.eq.s32.totalorder %s34, 17
      %p227 = scmp.ne.s32.totalorder %s222, %s224
      %p228 = scmp.eq.s32.totalorder %s34, 0
      %p229 = por %p227, %p228
      %p230 = scmp.ne.s32.totalorder %s222, %s224
      %p231 = scmp.eq.s32.totalorder %s39, 17
      %p232 = por %p230, %p231
      %p233 = scmp.ne.s32.totalorder %s224, %s225
      %p234 = scmp.eq.s32.totalorder %s39, 0
      %p235 = por %p233, %p234
      %p236 = scmp.ne.s32.totalorder %s224, %s225
      %p237 = scmp.eq.s32.totalorder %s40, 17
      %p238 = por %p236, %p237
      %p240 = scmp.ne.s32.totalorder %s225, %s239
      %p241 = scmp.eq.s32.totalorder %s40, 0
      %p242 = por %p240, %p241
      %s244 = sadd.s32 %s243, 1
      %p247 = scmp.eq.s32.totalorder %s34, 17
      %p248 = scmp.ne.s32.totalorder %s243, %s245
      %p249 = scmp.eq.s32.totalorder %s34, 0
      %p250 = por %p248, %p249
      %p251 = scmp.ne.s32.totalorder %s243, %s245
      %p252 = scmp.eq.s32.totalorder %s39, 17
      %p253 = por %p251, %p252
      %p254 = scmp.ne.s32.totalorder %s245, %s246
      %p255 = scmp.eq.s32.totalorder %s39, 0
      %p256 = por %p254, %p255
      %p257 = scmp.ne.s32.totalorder %s245, %s246
      %p258 = scmp.eq.s32.totalorder %s40, 17
      %p259 = por %p257, %p258
      %p261 = scmp.ne.s32.totalorder %s246, %s260
      %p262 = scmp.eq.s32.totalorder %s40, 0
      %p263 = por %p261, %p262
      %s265 = sadd.s32 %s264, 1
      %p268 = scmp.eq.s32.totalorder %s34, 17
      %p269 = scmp.ne.s32.totalorder %s264, %s266
      %p270 = scmp.eq.s32.totalorder %s34, 0
      %p271 = por %p269, %p270
      %p272 = scmp.ne.s32.totalorder %s264, %s266
      %p273 = scmp.eq.s32.totalorder %s39, 17
      %p274 = por %p272, %p273
      %p275 = scmp.ne.s32.totalorder %s266, %s267
      %p276 = scmp.eq.s32.totalorder %s39, 0
      %p277 = por %p275, %p276
      %p278 = scmp.ne.s32.totalorder %s266, %s267
      %p279 = scmp.eq.s32.totalorder %s40, 17
      %p280 = por %p278, %p279
      %p282 = scmp.ne.s32.totalorder %s267, %s281
      %p283 = scmp.eq.s32.totalorder %s40, 0
      %p284 = por %p282, %p283
      %s286 = sadd.s32 %s285, 1
      %p289 = scmp.eq.s32.totalorder %s34, 17
      %p290 = scmp.ne.s32.totalorder %s285, %s287
      %p291 = scmp.eq.s32.totalorder %s34, 0
      %p292 = por %p290, %p291
      %p293 = scmp.ne.s32.totalorder %s285, %s287
      %p294 = scmp.eq.s32.totalorder %s39, 17
      %p295 = por %p293, %p294
      %p296 = scmp.ne.s32.totalorder %s287, %s288
      %p297 = scmp.eq.s32.totalorder %s39, 0
      %p298 = por %p296, %p297
      %p299 = scmp.ne.s32.totalorder %s287, %s288
      %p300 = scmp.eq.s32.totalorder %s40, 17
      %p301 = por %p299, %p300
      %p303 = scmp.ne.s32.totalorder %s288, %s302
      %p304 = scmp.eq.s32.totalorder %s40, 0
      %p305 = por %p303, %p304
      %s306 = ssub.s32 %s42, %s49
      %s307 = ssub.s32 %s41, %s53
      %s308 = sor.u32 %s306, %s307
      %p309 = scmp.eq.s32.totalorder %s308, 0
      %s311 = sadd.s32 %s310, 1
      %s312 = scalar_select %p309, %s310, %s311
      %p315 = pneg %p309
      %p316 = scmp.eq.s32.totalorder %s34, 17
      %p317 = por %p315, %p316
      %p318 = scmp.ne.s32.totalorder %s310, %s313
      %p319 = scmp.eq.s32.totalorder %s34, 0
      %p320 = por %p318, %p319
      %p321 = scmp.ne.s32.totalorder %s310, %s313
      %p322 = scmp.eq.s32.totalorder %s39, 17
      %p323 = por %p321, %p322
      %p324 = scmp.ne.s32.totalorder %s313, %s314
      %p325 = scmp.eq.s32.totalorder %s39, 0
      %p326 = por %p324, %p325
      %p327 = scmp.ne.s32.totalorder %s313, %s314
      %p328 = scmp.eq.s32.totalorder %s40, 17
      %p329 = por %p327, %p328
      %p331 = scmp.ne.s32.totalorder %s314, %s330
      %p332 = scmp.eq.s32.totalorder %s40, 0
      %p333 = por %p331, %p332
      %s334 = ssub.s32 8, %s42
      %s335 = ssub.s32 8, %s49
      %s336 = ssub.s32 %s334, %s335
      %s337 = ssub.s32 %s41, %s53
      %s338 = sor.u32 %s336, %s337
      %p339 = scmp.eq.s32.totalorder %s338, 0
      %s341 = sadd.s32 %s340, 1
      %s342 = scalar_select %p339, %s340, %s341
      %p345 = pneg %p339
      %p346 = scmp.eq.s32.totalorder %s34, 17
      %p347 = por %p345, %p346
      %p348 = scmp.ne.s32.totalorder %s340, %s343
      %p349 = scmp.eq.s32.totalorder %s34, 0
      %p350 = por %p348, %p349
      %p351 = scmp.ne.s32.totalorder %s340, %s343
      %p352 = scmp.eq.s32.totalorder %s39, 17
      %p353 = por %p351, %p352
      %p354 = scmp.ne.s32.totalorder %s343, %s344
      %p355 = scmp.eq.s32.totalorder %s39, 0
      %p356 = por %p354, %p355
      %p357 = scmp.ne.s32.totalorder %s343, %s344
      %p358 = scmp.eq.s32.totalorder %s40, 17
      %p359 = por %p357, %p358
      %p361 = scmp.ne.s32.totalorder %s344, %s360
      %p362 = scmp.eq.s32.totalorder %s40, 0
      %p363 = por %p361, %p362
      %s364 = ssub.s32 %s41, %s53
      %p365 = scmp.eq.s32.totalorder %s364, 0
      %s367 = sadd.s32 %s366, 1
      %s368 = scalar_select %p365, %s366, %s367
      %p371 = pneg %p365
      %p372 = scmp.eq.s32.totalorder %s34, 17
      %p373 = por %p371, %p372
      %p374 = scmp.ne.s32.totalorder %s366, %s369
      %p375 = scmp.eq.s32.totalorder %s34, 0
      %p376 = por %p374, %p375
      %p377 = scmp.ne.s32.totalorder %s366, %s369
      %p378 = scmp.eq.s32.totalorder %s39, 17
      %p379 = por %p377, %p378
      %p380 = scmp.ne.s32.totalorder %s369, %s370
      %p381 = scmp.eq.s32.totalorder %s39, 0
      %p382 = por %p380, %p381
      %p383 = scmp.ne.s32.totalorder %s369, %s370
      %p384 = scmp.eq.s32.totalorder %s40, 17
      %p385 = por %p383, %p384
      %p387 = scmp.ne.s32.totalorder %s370, %s386
      %p388 = scmp.eq.s32.totalorder %s40, 0
      %p389 = por %p387, %p388
      %p390 = scmp.le.s32.totalorder 1, %s34
      %p391 = scmp.lt.s32.totalorder %s34, 19
      %p392 = pnand %p390, %p391
      %p393 = pneg %p392
      // Predicated region
      $region9: #{tpu_custom_call.1} parent=5 // pred_check
        _
      $region10: #{tpu_custom_call.1} parent=5 // pred_check_branch
        %395 = sbr.rel (%p392) target = $region12
      $region11: #{tpu_custom_call.1} parent=5 // pred_region
        %s396 = ssub.s32 %s34, 1
        // Predicated region
        $region13: #{tpu_custom_call.1} parent=11 // pred_check
          %p397 = pneg %p151
        $region14: #{tpu_custom_call.1} parent=11 // pred_check_branch
          %399 = sbr.rel (%p397) target = $region16
        $region15: #{tpu_custom_call.1} parent=11 // pred_region
          %s401 = ssub.s32 6144, 6144
          %402 = vsyncadd [#allocation8], %s401
          %s403 = sshll.u32 [#allocation9], 4
          %s404 = int_to_ptr.vmem [resolvable:$true] %s403
          %409 = dma.hbm_to_vmem [thread:$0]  %s3, 6144, %s404, [#allocation8], 384, 384, 24
        $region16: #{tpu_custom_call.1} parent=11 // pred_fallthru
          _
        // Predicated region
        $region17: #{tpu_custom_call.1} parent=11 // pred_check
          %p410 = pneg %p172
        $region18: #{tpu_custom_call.1} parent=11 // pred_check_branch
          %412 = sbr.rel (%p410) target = $region20
        $region19: #{tpu_custom_call.1} parent=11 // pred_region
          %s414 = ssub.s32 6144, 6144
          %415 = vsyncadd [#allocation11], %s414
          %s416 = sshll.u32 [#allocation10], 4
          %s417 = int_to_ptr.vmem [resolvable:$true] %s416
          %422 = dma.hbm_to_vmem [thread:$0]  %s4, 6144, %s417, [#allocation11], 384, 384, 24
        $region20: #{tpu_custom_call.1} parent=11 // pred_fallthru
          _
        // Predicated region
        $region21: #{tpu_custom_call.1} parent=11 // pred_check
          %p423 = pneg %p193
        $region22: #{tpu_custom_call.1} parent=11 // pred_check_branch
          %425 = sbr.rel (%p423) target = $region24
        $region23: #{tpu_custom_call.1} parent=11 // pred_region
          _
        $region24: #{tpu_custom_call.1} parent=11 // pred_fallthru
          _
        // Predicated region
        $region25: #{tpu_custom_call.1} parent=11 // pred_check
          %p426 = pneg %p214
        $region26: #{tpu_custom_call.1} parent=11 // pred_check_branch
          %428 = sbr.rel (%p426) target = $region28
        $region27: #{tpu_custom_call.1} parent=11 // pred_region
          _
        $region28: #{tpu_custom_call.1} parent=11 // pred_fallthru
          _
        // Predicated region
        $region29: #{tpu_custom_call.1} parent=11 // pred_check
          %p429 = pneg %p235
        $region30: #{tpu_custom_call.1} parent=11 // pred_check_branch
          %431 = sbr.rel (%p429) target = $region32
        $region31: #{tpu_custom_call.1} parent=11 // pred_region
          %s433 = ssub.s32 6144, 6144
          %434 = vsyncadd [#allocation11], %s433
          %s435 = sshll.u32 [#allocation12], 4
          %s436 = int_to_ptr.vmem [resolvable:$true] %s435
          %441 = dma.hbm_to_vmem [thread:$0]  %s7, 6144, %s436, [#allocation11], 384, 384, 24
        $region32: #{tpu_custom_call.1} parent=11 // pred_fallthru
          _
        // Predicated region
        $region33: #{tpu_custom_call.1} parent=11 // pred_check
          %p442 = pneg %p256
        $region34: #{tpu_custom_call.1} parent=11 // pred_check_branch
          %444 = sbr.rel (%p442) target = $region36
        $region35: #{tpu_custom_call.1} parent=11 // pred_region
          %s446 = ssub.s32 6144, 6144
          %447 = vsyncadd [#allocation14], %s446
          %s448 = sshll.u32 [#allocation13], 4
          %s449 = int_to_ptr.vmem [resolvable:$true] %s448
          %454 = dma.hbm_to_vmem [thread:$0]  %s8, 6144, %s449, [#allocation14], 384, 384, 24
        $region36: #{tpu_custom_call.1} parent=11 // pred_fallthru
          _
        // Predicated region
        $region37: #{tpu_custom_call.1} parent=11 // pred_check
          %p455 = pneg %p277
        $region38: #{tpu_custom_call.1} parent=11 // pred_check_branch
          %457 = sbr.rel (%p455) target = $region40
        $region39: #{tpu_custom_call.1} parent=11 // pred_region
          _
        $region40: #{tpu_custom_call.1} parent=11 // pred_fallthru
          _
        // Predicated region
        $region41: #{tpu_custom_call.1} parent=11 // pred_check
          %p458 = pneg %p298
        $region42: #{tpu_custom_call.1} parent=11 // pred_check_branch
          %460 = sbr.rel (%p458) target = $region44
        $region43: #{tpu_custom_call.1} parent=11 // pred_region
          _
        $region44: #{tpu_custom_call.1} parent=11 // pred_fallthru
          _
      $region12: #{tpu_custom_call.1} parent=5 // pred_fallthru
        _
      %p461 = scmp.lt.s32.totalorder %s34, 18
      // Predicated region
      $region45: #{tpu_custom_call.1} parent=5 // pred_check
        %p462 = pneg %p461
      $region46: #{tpu_custom_call.1} parent=5 // pred_check_branch
        %464 = sbr.rel (%p462) target = $region48
      $region47: #{tpu_custom_call.1} parent=5 // pred_region
        // Predicated region
        $region49: #{tpu_custom_call.1} parent=47 // pred_check
          %p465 = pneg %p68
        $region50: #{tpu_custom_call.1} parent=47 // pred_check_branch
          %467 = sbr.rel (%p465) target = $region52
        $region51: #{tpu_custom_call.1} parent=47 // pred_region
          %s468 = sand.u32 %s58, 1
          %s469 = scalar_lea.sflag [#allocation5], %s468
          %s470 = sand.u32 %s58, 1
          %s471 = smul.addr %s470, 8
          %s472 = scalar_lea.vmem [#allocation4], %s471
          %s474 = ssub.s32 128, 128
          %475 = vsyncadd %s469, %s474
          %s476 = smul.addr %s42, 2
          %s477 = sadd.s32 %s41, %s476
          %s478 = smul.addr %s477, 128
          %s479 = scalar_lea.hbm %s0, %s478
          %s481 = sshll.u32 %s472, 4
          %s482 = int_to_ptr.vmem [resolvable:$true] %s481
          %484 = dma.hbm_to_vmem [thread:$0]  %s479, 128, %s482, %s469
        $region52: #{tpu_custom_call.1} parent=47 // pred_fallthru
          _
        // Predicated region
        $region53: #{tpu_custom_call.1} parent=47 // pred_check
          %p485 = pneg %p98
        $region54: #{tpu_custom_call.1} parent=47 // pred_check_branch
          %487 = sbr.rel (%p485) target = $region56
        $region55: #{tpu_custom_call.1} parent=47 // pred_region
          %s488 = sand.u32 %s34, 1
          %s489 = scalar_lea.sflag [#allocation8], %s488
          %s490 = sand.u32 %s88, 1
          %s491 = smul.addr %s490, 8
          %s492 = scalar_lea.vmem [#allocation7], %s491
          %s493 = ssub.s32 8, %s42
          %s495 = ssub.s32 128, 128
          %496 = vsyncadd %s489, %s495
          %s497 = smul.addr %s493, 2
          %s498 = sadd.s32 %s41, %s497
          %s499 = smul.addr %s498, 128
          %s500 = scalar_lea.hbm %s1, %s499
          %s502 = sshll.u32 %s492, 4
          %s503 = int_to_ptr.vmem [resolvable:$true] %s502
          %505 = dma.hbm_to_vmem [thread:$0]  %s500, 128, %s503, %s489
        $region56: #{tpu_custom_call.1} parent=47 // pred_fallthru
          _
        // Predicated region
        $region57: #{tpu_custom_call.1} parent=47 // pred_check
          %p506 = pneg %p124
        $region58: #{tpu_custom_call.1} parent=47 // pred_check_branch
          %508 = sbr.rel (%p506) target = $region60
        $region59: #{tpu_custom_call.1} parent=47 // pred_region
          %p509 = scmp.lt.s32.totalorder %s41, 1
          %s510 = scalar_select %p509, %s41, 1
          %s511 = smul.addr %s510, 8
          %s512 = scalar_lea.vmem %s2, %s511
        $region60: #{tpu_custom_call.1} parent=47 // pred_fallthru
          _
      $region48: #{tpu_custom_call.1} parent=5 // pred_fallthru
        _
      %p513 = scmp.le.s32.totalorder 1, %s34
      %p514 = scmp.lt.s32.totalorder %s34, 19
      %p515 = pnand %p513, %p514
      %p516 = pneg %p515
      // Predicated region
      $region61: #{tpu_custom_call.1} parent=5 // pred_check
        _
      $region62: #{tpu_custom_call.1} parent=5 // pred_check_branch
        %518 = sbr.rel (%p515) target = $region64
      $region63: #{tpu_custom_call.1} parent=5 // pred_region
        %s519 = ssub.s32 %s34, 1
        %s520 = sand.u32 %s61, 1
        %s521 = scalar_lea.sflag [#allocation5], %s520
        %s522 = sand.u32 %s61, 1
        %s523 = smul.addr %s522, 8
        %s524 = scalar_lea.vmem [#allocation4], %s523
        // Predicated region
        $region65: #{tpu_custom_call.1} parent=63 // pred_check
          %p525 = pneg %p74
        $region66: #{tpu_custom_call.1} parent=63 // pred_check_branch
          %527 = sbr.rel (%p525) target = $region68
        $region67: #{tpu_custom_call.1} parent=63 // pred_region
          %528 = dma.done %s521, 128
        $region68: #{tpu_custom_call.1} parent=63 // pred_fallthru
          _
        %s529 = sand.u32 %s39, 1
        %s530 = scalar_lea.sflag [#allocation8], %s529
        %s531 = sand.u32 %s91, 1
        %s532 = smul.addr %s531, 8
        %s533 = scalar_lea.vmem [#allocation7], %s532
        // Predicated region
        $region69: #{tpu_custom_call.1} parent=63 // pred_check
          %p534 = pneg %p104
        $region70: #{tpu_custom_call.1} parent=63 // pred_check_branch
          %536 = sbr.rel (%p534) target = $region72
        $region71: #{tpu_custom_call.1} parent=63 // pred_region
          %537 = dma.done %s530, 128
        $region72: #{tpu_custom_call.1} parent=63 // pred_fallthru
          _
        // Predicated region
        $region73: #{tpu_custom_call.1} parent=63 // pred_check
          %p538 = pneg %p151
        $region74: #{tpu_custom_call.1} parent=63 // pred_check_branch
          %540 = sbr.rel (%p538) target = $region76
        $region75: #{tpu_custom_call.1} parent=63 // pred_region
          %541 = dma.done [#allocation8], 6144
        $region76: #{tpu_custom_call.1} parent=63 // pred_fallthru
          _
        // Predicated region
        $region77: #{tpu_custom_call.1} parent=63 // pred_check
          %p542 = pneg %p172
        $region78: #{tpu_custom_call.1} parent=63 // pred_check_branch
          %544 = sbr.rel (%p542) target = $region80
        $region79: #{tpu_custom_call.1} parent=63 // pred_region
          %545 = dma.done [#allocation11], 6144
        $region80: #{tpu_custom_call.1} parent=63 // pred_fallthru
          _
        // Predicated region
        $region81: #{tpu_custom_call.1} parent=63 // pred_check
          %p546 = pneg %p235
        $region82: #{tpu_custom_call.1} parent=63 // pred_check_branch
          %548 = sbr.rel (%p546) target = $region84
        $region83: #{tpu_custom_call.1} parent=63 // pred_region
          %549 = dma.done [#allocation11], 6144
        $region84: #{tpu_custom_call.1} parent=63 // pred_fallthru
          _
        // Predicated region
        $region85: #{tpu_custom_call.1} parent=63 // pred_check
          %p550 = pneg %p256
        $region86: #{tpu_custom_call.1} parent=63 // pred_check_branch
          %552 = sbr.rel (%p550) target = $region88
        $region87: #{tpu_custom_call.1} parent=63 // pred_region
          %553 = dma.done [#allocation14], 6144
        $region88: #{tpu_custom_call.1} parent=63 // pred_fallthru
          _
        %s554 = sand.u32 %s61, 1
        %s555 = scalar_lea.sflag [#allocation5], %s554
        %s556 = sand.u32 %s61, 1
        %s557 = smul.addr %s556, 8
        %s558 = scalar_lea.vmem [#allocation4], %s557
        %p559 = pneg %p74
        %p560 = pneg %p71
        %s561 = sand.u32 %s39, 1
        %s562 = scalar_lea.sflag [#allocation8], %s561
        %s563 = sand.u32 %s91, 1
        %s564 = smul.addr %s563, 8
        %s565 = scalar_lea.vmem [#allocation7], %s564
        %p566 = pneg %p104
        %p567 = pneg %p101
        %p568 = scmp.lt.s32.totalorder %s43, 1
        %s569 = scalar_select %p568, %s43, 1
        %s570 = smul.addr %s569, 8
        %s571 = scalar_lea.vmem %s2, %s570
        %p572 = pneg %p130
        %p573 = pneg %p127
        %p574 = pneg %p151
        %p575 = pneg %p148
        %p576 = pneg %p172
        %p577 = pneg %p169
        %p578 = pneg %p193
        %p579 = pneg %p190
        %p580 = pneg %p214
        %p581 = pneg %p211
        %p582 = pneg %p235
        %p583 = pneg %p232
        %p584 = pneg %p256
        %p585 = pneg %p253
        %p586 = pneg %p277
        %p587 = pneg %p274
        %p588 = pneg %p298
        %p589 = pneg %p295
        %p590 = pneg %p326
        %p591 = pneg %p323
        %s592 = sand.u32 %s313, 1
        %s593 = scalar_lea.sflag [#allocation6], %s592
        %s594 = sand.u32 %s313, 1
        %s595 = smul.addr %s594, 8
        %s596 = scalar_lea.vmem [#allocation15], %s595
        %p597 = pneg %p356
        %p598 = pneg %p353
        %s599 = sand.u32 %s39, 1
        %s600 = scalar_lea.sflag [#allocation17], %s599
        %s601 = sand.u32 %s343, 1
        %s602 = smul.addr %s601, 8
        %s603 = scalar_lea.vmem [#allocation16], %s602
        %p604 = pneg %p382
        %p605 = pneg %p379
        %s606 = sand.u32 %s39, 1
        %s607 = scalar_lea.sflag [#allocation17], %s606
        %s608 = sand.u32 %s369, 1
        %s609 = smul.addr %s608, 8
        %s610 = scalar_lea.vmem [#allocation18], %s609
        %s611 = ssub.s32 8, %s44
        %p612 = scmp.lt.s32.totalorder %s43, 1
        %s613 = scalar_select %p612, %s43, 1
        %s614 = smul.addr %s613, 8
        %s615 = scalar_lea.vmem %s2, %s614
        %s616 = ssub.s32 8, %s44
        %p617 = scmp.eq.s32.totalorder %s44, 0
        // Predicated region
        $region89: #{tpu_custom_call.1} parent=63 // pred_check
          %p618 = pneg %p617
        $region90: #{tpu_custom_call.1} parent=63 // pred_check_branch
          %620 = sbr.rel (%p618) target = $region92
        $region91: #{tpu_custom_call.1} parent=63 // pred_region
          %621 = vst [vmem:[#allocation2] sm:$0xff] 0.0
          %622 = vst [vmem:[#allocation3] sm:$0xff] 0.0
        $region92: #{tpu_custom_call.1} parent=63 // pred_fallthru
          _
        %v623 = vld [vmem:[%s615] sm:$0xff]
        %v624 = vstv %s44
        %vm625 = vcmp.gt.s32.totalorder %v623, %v624
        %s626 = ssub.s32 8, %s44
        %v627 = vstv %s626
        %vm628 = vcmp.gt.s32.totalorder %v623, %v627
        %v629 = vld [vmem:[#allocation2] sm:$0xff]
        %v630 = vld [vmem:[%s524] sm:$0xff]
        %v631 = vld [vmem:[#allocation9] sm:$0xff]
        %v632 = vld [vmem:[#allocation9 + $0x8] sm:$0xff]
        %v633 = vld [vmem:[#allocation9 + $0x10] sm:$0xff]
        %v634 = vld [vmem:[#allocation9 + $0x18] sm:$0xff]
        %v635 = vld [vmem:[#allocation9 + $0x20] sm:$0xff]
        %v636 = vld [vmem:[#allocation9 + $0x28] sm:$0xff]
        %v637 = vld [vmem:[#allocation9 + $0x30] sm:$0xff]
        %v638 = vld [vmem:[#allocation9 + $0x38] sm:$0xff]
        %v639 = vld [vmem:[#allocation9 + $0x40] sm:$0xff]
        %v640 = vld [vmem:[#allocation9 + $0x48] sm:$0xff]
        %v641 = vld [vmem:[#allocation9 + $0x50] sm:$0xff]
        %v642 = vld [vmem:[#allocation9 + $0x58] sm:$0xff]
        %v643 = vld [vmem:[#allocation9 + $0x60] sm:$0xff]
        %v644 = vld [vmem:[#allocation9 + $0x68] sm:$0xff]
        %v645 = vld [vmem:[#allocation9 + $0x70] sm:$0xff]
        %v646 = vld [vmem:[#allocation9 + $0x78] sm:$0xff]
        %v647 = vld [vmem:[#allocation9 + $0x80] sm:$0xff]
        %v648 = vld [vmem:[#allocation9 + $0x88] sm:$0xff]
        %v649 = vld [vmem:[#allocation9 + $0x90] sm:$0xff]
        %v650 = vld [vmem:[#allocation9 + $0x98] sm:$0xff]
        %v651 = vld [vmem:[#allocation9 + $0xa0] sm:$0xff]
        %v652 = vld [vmem:[#allocation9 + $0xa8] sm:$0xff]
        %v653 = vld [vmem:[#allocation9 + $0xb0] sm:$0xff]
        %v654 = vld [vmem:[#allocation9 + $0xb8] sm:$0xff]
        %v655 = vld [vmem:[#allocation9 + $0xc0] sm:$0xff]
        %v656 = vld [vmem:[#allocation9 + $0xc8] sm:$0xff]
        %v657 = vld [vmem:[#allocation9 + $0xd0] sm:$0xff]
        %v658 = vld [vmem:[#allocation9 + $0xd8] sm:$0xff]
        %v659 = vld [vmem:[#allocation9 + $0xe0] sm:$0xff]
        %v660 = vld [vmem:[#allocation9 + $0xe8] sm:$0xff]
        %v661 = vld [vmem:[#allocation9 + $0xf0] sm:$0xff]
        %v662 = vld [vmem:[#allocation9 + $0xf8] sm:$0xff]
        %v663 = vld [vmem:[#allocation9 + $0x100] sm:$0xff]
        %v664 = vld [vmem:[#allocation9 + $0x108] sm:$0xff]
        %v665 = vld [vmem:[#allocation9 + $0x110] sm:$0xff]
        %v666 = vld [vmem:[#allocation9 + $0x118] sm:$0xff]
        %v667 = vld [vmem:[#allocation9 + $0x120] sm:$0xff]
        %v668 = vld [vmem:[#allocation9 + $0x128] sm:$0xff]
        %v669 = vld [vmem:[#allocation9 + $0x130] sm:$0xff]
        %v670 = vld [vmem:[#allocation9 + $0x138] sm:$0xff]
        %v671 = vld [vmem:[#allocation9 + $0x140] sm:$0xff]
        %v672 = vld [vmem:[#allocation9 + $0x148] sm:$0xff]
        %v673 = vld [vmem:[#allocation9 + $0x150] sm:$0xff]
        %v674 = vld [vmem:[#allocation9 + $0x158] sm:$0xff]
        %v675 = vld [vmem:[#allocation9 + $0x160] sm:$0xff]
        %v676 = vld [vmem:[#allocation9 + $0x168] sm:$0xff]
        %v677 = vld [vmem:[#allocation9 + $0x170] sm:$0xff]
        %v678 = vld [vmem:[#allocation9 + $0x178] sm:$0xff]
        %v679 = vld [vmem:[#allocation10] sm:$0xff]
        %v680 = vld [vmem:[#allocation10 + $0x8] sm:$0xff]
        %v681 = vld [vmem:[#allocation10 + $0x10] sm:$0xff]
        %v682 = vld [vmem:[#allocation10 + $0x18] sm:$0xff]
        %v683 = vld [vmem:[#allocation10 + $0x20] sm:$0xff]
        %v684 = vld [vmem:[#allocation10 + $0x28] sm:$0xff]
        %v685 = vld [vmem:[#allocation10 + $0x30] sm:$0xff]
        %v686 = vld [vmem:[#allocation10 + $0x38] sm:$0xff]
        %v687 = vld [vmem:[#allocation10 + $0x40] sm:$0xff]
        %v688 = vld [vmem:[#allocation10 + $0x48] sm:$0xff]
        %v689 = vld [vmem:[#allocation10 + $0x50] sm:$0xff]
        %v690 = vld [vmem:[#allocation10 + $0x58] sm:$0xff]
        %v691 = vld [vmem:[#allocation10 + $0x60] sm:$0xff]
        %v692 = vld [vmem:[#allocation10 + $0x68] sm:$0xff]
        %v693 = vld [vmem:[#allocation10 + $0x70] sm:$0xff]
        %v694 = vld [vmem:[#allocation10 + $0x78] sm:$0xff]
        %v695 = vld [vmem:[#allocation10 + $0x80] sm:$0xff]
        %v696 = vld [vmem:[#allocation10 + $0x88] sm:$0xff]
        %v697 = vld [vmem:[#allocation10 + $0x90] sm:$0xff]
        %v698 = vld [vmem:[#allocation10 + $0x98] sm:$0xff]
        %v699 = vld [vmem:[#allocation10 + $0xa0] sm:$0xff]
        %v700 = vld [vmem:[#allocation10 + $0xa8] sm:$0xff]
        %v701 = vld [vmem:[#allocation10 + $0xb0] sm:$0xff]
        %v702 = vld [vmem:[#allocation10 + $0xb8] sm:$0xff]
        %v703 = vld [vmem:[#allocation10 + $0xc0] sm:$0xff]
        %v704 = vld [vmem:[#allocation10 + $0xc8] sm:$0xff]
        %v705 = vld [vmem:[#allocation10 + $0xd0] sm:$0xff]
        %v706 = vld [vmem:[#allocation10 + $0xd8] sm:$0xff]
        %v707 = vld [vmem:[#allocation10 + $0xe0] sm:$0xff]
        %v708 = vld [vmem:[#allocation10 + $0xe8] sm:$0xff]
        %v709 = vld [vmem:[#allocation10 + $0xf0] sm:$0xff]
        %v710 = vld [vmem:[#allocation10 + $0xf8] sm:$0xff]
        %v711 = vld [vmem:[#allocation10 + $0x100] sm:$0xff]
        %v712 = vld [vmem:[#allocation10 + $0x108] sm:$0xff]
        %v713 = vld [vmem:[#allocation10 + $0x110] sm:$0xff]
        %v714 = vld [vmem:[#allocation10 + $0x118] sm:$0xff]
        %v715 = vld [vmem:[#allocation10 + $0x120] sm:$0xff]
        %v716 = vld [vmem:[#allocation10 + $0x128] sm:$0xff]
        %v717 = vld [vmem:[#allocation10 + $0x130] sm:$0xff]
        %v718 = vld [vmem:[#allocation10 + $0x138] sm:$0xff]
        %v719 = vld [vmem:[#allocation10 + $0x140] sm:$0xff]
        %v720 = vld [vmem:[#allocation10 + $0x148] sm:$0xff]
        %v721 = vld [vmem:[#allocation10 + $0x150] sm:$0xff]
        %v722 = vld [vmem:[#allocation10 + $0x158] sm:$0xff]
        %v723 = vld [vmem:[#allocation10 + $0x160] sm:$0xff]
        %v724 = vld [vmem:[#allocation10 + $0x168] sm:$0xff]
        %v725 = vld [vmem:[#allocation10 + $0x170] sm:$0xff]
        %v726 = vld [vmem:[#allocation10 + $0x178] sm:$0xff]
        %v727 = vld [vmem:[%s5] sm:$0x7]
        %v729 = vlaneseq
        %v730 = vshrl.u32 %v729, 7
        %v731 = vsub.s32 0, %v730
        %v732 = vrot.slane %v727, %v731
        %v733 = vlaneseq
        %v734 = vshrl.u32 %v733, 7
        %v735 = vsub.s32 1, %v734
        %v736 = vrot.slane %v727, %v735
        %v737 = vlaneseq
        %v738 = vshrl.u32 %v737, 7
        %v739 = vsub.s32 2, %v738
        %v740 = vrot.slane %v727, %v739
        %744 = vmatprep.subr.mxu0 %v677
        %745 = vmatpush1.msra.mxu0 %v676
        %746 = vmatprep.subr.mxu0 %v674
        %747 = vmatpush1.msra.mxu0 %v673
        %748 = vmatprep.subr.mxu0 %v671
        %749 = vmatpush1.msra.mxu0 %v670
        %750 = vmatprep.subr.mxu0 %v668
        %751 = vmatpush1.msra.mxu0 %v667
        %752 = vmatprep.subr.mxu0 %v665
        %753 = vmatpush1.msra.mxu0 %v664
        %754 = vmatprep.subr.mxu0 %v662
        %755 = vmatpush1.msra.mxu0 %v661
        %756 = vmatprep.subr.mxu0 %v659
        %757 = vmatpush1.msra.mxu0 %v658
        %758 = vmatprep.subr.mxu0 %v656
        %759 = vmatpush1.msra.mxu0 %v655
        %760 = vmatprep.subr.mxu0 %v653
        %761 = vmatpush1.msra.mxu0 %v652
        %762 = vmatprep.subr.mxu0 %v650
        %763 = vmatpush1.msra.mxu0 %v649
        %764 = vmatprep.subr.mxu0 %v647
        %765 = vmatpush1.msra.mxu0 %v646
        %766 = vmatprep.subr.mxu0 %v644
        %767 = vmatpush1.msra.mxu0 %v643
        %768 = vmatprep.subr.mxu0 %v641
        %769 = vmatpush1.msra.mxu0 %v640
        %770 = vmatprep.subr.mxu0 %v638
        %771 = vmatpush1.msra.mxu0 %v637
        %772 = vmatprep.subr.mxu0 %v635
        %773 = vmatpush1.msra.mxu0 %v634
        %774 = vmatprep.subr.mxu0 %v632
        %775 = vmatpush1.msra.mxu0 %v631
        %776 = vmatprep.subr.mxu0 0.0
        %777 = vmatpush2.msra.mxu0 0.0
        %778 = vmatprep.subr.mxu0 0.0
        %779 = vmatpush2.msra.mxu0 0.0
        %780 = vmatprep.subr.mxu0 0.0
        %781 = vmatpush2.msra.mxu0 0.0
        %782 = vmatprep.subr.mxu0 0.0
        %783 = vmatpush2.msra.mxu0 0.0
        %784 = vmatprep.subr.mxu0 0.0
        %785 = vmatpush2.msra.mxu0 0.0
        %786 = vmatprep.subr.mxu0 0.0
        %787 = vmatpush2.msra.mxu0 0.0
        %788 = vmatprep.subr.mxu0 0.0
        %789 = vmatpush2.msra.mxu0 0.0
        %790 = vmatprep.subr.mxu0 0.0
        %791 = vmatpush2.msra.mxu0 0.0
        %792 = vmatprep.subr.mxu0 0.0
        %793 = vmatpush2.msra.mxu0 0.0
        %794 = vmatprep.subr.mxu0 0.0
        %795 = vmatpush2.msra.mxu0 0.0
        %796 = vmatprep.subr.mxu0 0.0
        %797 = vmatpush2.msra.mxu0 0.0
        %798 = vmatprep.subr.mxu0 0.0
        %799 = vmatpush2.msra.mxu0 0.0
        %800 = vmatprep.subr.mxu0 0.0
        %801 = vmatpush2.msra.mxu0 0.0
        %802 = vmatprep.subr.mxu0 0.0
        %803 = vmatpush2.msra.mxu0 0.0
        %804 = vmatprep.subr.mxu0 0.0
        %805 = vmatpush2.msra.mxu0 0.0
        %806 = vmatprep.subr.mxu0 0.0
        %807 = vmatpush2.msra.mxu0 0.0
        %808 = vmatprep.mubr.f32.mxu0 0.0
        %809 = vmatmul.mubr.f32.gmra.mxu0 %v630
        %v810 = vpop.f32.mrf.mxu0
        %v811 = vadd.f32 %v732, %v810
        %v812 = vpop.f32.mrf.mxu0
        %v813 = vadd.f32 %v736, %v812
        %814 = vdwg.mxu0
        %815 = vmatprep.subr.mxu0 0.0
        %816 = vmatpush1.msra.mxu0 %v678
        %817 = vmatprep.subr.mxu0 0.0
        %818 = vmatpush1.msra.mxu0 %v675
        %819 = vmatprep.subr.mxu0 0.0
        %820 = vmatpush1.msra.mxu0 %v672
        %821 = vmatprep.subr.mxu0 0.0
        %822 = vmatpush1.msra.mxu0 %v669
        %823 = vmatprep.subr.mxu0 0.0
        %824 = vmatpush1.msra.mxu0 %v666
        %825 = vmatprep.subr.mxu0 0.0
        %826 = vmatpush1.msra.mxu0 %v663
        %827 = vmatprep.subr.mxu0 0.0
        %828 = vmatpush1.msra.mxu0 %v660
        %829 = vmatprep.subr.mxu0 0.0
        %830 = vmatpush1.msra.mxu0 %v657
        %831 = vmatprep.subr.mxu0 0.0
        %832 = vmatpush1.msra.mxu0 %v654
        %833 = vmatprep.subr.mxu0 0.0
        %834 = vmatpush1.msra.mxu0 %v651
        %835 = vmatprep.subr.mxu0 0.0
        %836 = vmatpush1.msra.mxu0 %v648
        %837 = vmatprep.subr.mxu0 0.0
        %838 = vmatpush1.msra.mxu0 %v645
        %839 = vmatprep.subr.mxu0 0.0
        %840 = vmatpush1.msra.mxu0 %v642
        %841 = vmatprep.subr.mxu0 0.0
        %842 = vmatpush1.msra.mxu0 %v639
        %843 = vmatprep.subr.mxu0 0.0
        %844 = vmatpush1.msra.mxu0 %v636
        %845 = vmatprep.subr.mxu0 0.0
        %846 = vmatpush1.msra.mxu0 %v633
        %847 = vmatprep.subr.mxu0 0.0
        %848 = vmatpush2.msra.mxu0 0.0
        %849 = vmatprep.subr.mxu0 0.0
        %850 = vmatpush2.msra.mxu0 0.0
        %851 = vmatprep.subr.mxu0 0.0
        %852 = vmatpush2.msra.mxu0 0.0
        %853 = vmatprep.subr.mxu0 0.0
        %854 = vmatpush2.msra.mxu0 0.0
        %855 = vmatprep.subr.mxu0 0.0
        %856 = vmatpush2.msra.mxu0 0.0
        %857 = vmatprep.subr.mxu0 0.0
        %858 = vmatpush2.msra.mxu0 0.0
        %859 = vmatprep.subr.mxu0 0.0
        %860 = vmatpush2.msra.mxu0 0.0
        %861 = vmatprep.subr.mxu0 0.0
        %862 = vmatpush2.msra.mxu0 0.0
        %863 = vmatprep.subr.mxu0 0.0
        %864 = vmatpush2.msra.mxu0 0.0
        %865 = vmatprep.subr.mxu0 0.0
        %866 = vmatpush2.msra.mxu0 0.0
        %867 = vmatprep.subr.mxu0 0.0
        %868 = vmatpush2.msra.mxu0 0.0
        %869 = vmatprep.subr.mxu0 0.0
        %870 = vmatpush2.msra.mxu0 0.0
        %871 = vmatprep.subr.mxu0 0.0
        %872 = vmatpush2.msra.mxu0 0.0
        %873 = vmatprep.subr.mxu0 0.0
        %874 = vmatpush2.msra.mxu0 0.0
        %875 = vmatprep.subr.mxu0 0.0
        %876 = vmatpush2.msra.mxu0 0.0
        %877 = vmatprep.subr.mxu0 0.0
        %878 = vmatpush2.msra.mxu0 0.0
        %879 = vmatprep.mubr.f32.mxu0 0.0
        %880 = vmatmul.mubr.f32.gmra.mxu0 %v630
        %v881 = vpop.f32.mrf.mxu0
        %v882 = vadd.f32 %v740, %v881
        %v883 = vpop.f32.mrf.mxu0
        %884 = vdwg.mxu0
        %v885 = vld [vmem:[%s6] sm:$0x7]
        %v887 = vlaneseq
        %v888 = vshrl.u32 %v887, 7
        %v889 = vsub.s32 0, %v888
        %v890 = vrot.slane %v885, %v889
        %v891 = vlaneseq
        %v892 = vshrl.u32 %v891, 7
        %v893 = vsub.s32 1, %v892
        %v894 = vrot.slane %v885, %v893
        %v895 = vlaneseq
        %v896 = vshrl.u32 %v895, 7
        %v897 = vsub.s32 2, %v896
        %v898 = vrot.slane %v885, %v897
        %902 = vmatprep.subr.mxu0 %v725
        %903 = vmatpush1.msra.mxu0 %v724
        %904 = vmatprep.subr.mxu0 %v722
        %905 = vmatpush1.msra.mxu0 %v721
        %906 = vmatprep.subr.mxu0 %v719
        %907 = vmatpush1.msra.mxu0 %v718
        %908 = vmatprep.subr.mxu0 %v716
        %909 = vmatpush1.msra.mxu0 %v715
        %910 = vmatprep.subr.mxu0 %v713
        %911 = vmatpush1.msra.mxu0 %v712
        %912 = vmatprep.subr.mxu0 %v710
        %913 = vmatpush1.msra.mxu0 %v709
        %914 = vmatprep.subr.mxu0 %v707
        %915 = vmatpush1.msra.mxu0 %v706
        %916 = vmatprep.subr.mxu0 %v704
        %917 = vmatpush1.msra.mxu0 %v703
        %918 = vmatprep.subr.mxu0 %v701
        %919 = vmatpush1.msra.mxu0 %v700
        %920 = vmatprep.subr.mxu0 %v698
        %921 = vmatpush1.msra.mxu0 %v697
        %922 = vmatprep.subr.mxu0 %v695
        %923 = vmatpush1.msra.mxu0 %v694
        %924 = vmatprep.subr.mxu0 %v692
        %925 = vmatpush1.msra.mxu0 %v691
        %926 = vmatprep.subr.mxu0 %v689
        %927 = vmatpush1.msra.mxu0 %v688
        %928 = vmatprep.subr.mxu0 %v686
        %929 = vmatpush1.msra.mxu0 %v685
        %930 = vmatprep.subr.mxu0 %v683
        %931 = vmatpush1.msra.mxu0 %v682
        %932 = vmatprep.subr.mxu0 %v680
        %933 = vmatpush1.msra.mxu0 %v679
        %934 = vmatprep.subr.mxu0 0.0
        %935 = vmatpush2.msra.mxu0 0.0
        %936 = vmatprep.subr.mxu0 0.0
        %937 = vmatpush2.msra.mxu0 0.0
        %938 = vmatprep.subr.mxu0 0.0
        %939 = vmatpush2.msra.mxu0 0.0
        %940 = vmatprep.subr.mxu0 0.0
        %941 = vmatpush2.msra.mxu0 0.0
        %942 = vmatprep.subr.mxu0 0.0
        %943 = vmatpush2.msra.mxu0 0.0
        %944 = vmatprep.subr.mxu0 0.0
        %945 = vmatpush2.msra.mxu0 0.0
        %946 = vmatprep.subr.mxu0 0.0
        %947 = vmatpush2.msra.mxu0 0.0
        %948 = vmatprep.subr.mxu0 0.0
        %949 = vmatpush2.msra.mxu0 0.0
        %950 = vmatprep.subr.mxu0 0.0
        %951 = vmatpush2.msra.mxu0 0.0
        %952 = vmatprep.subr.mxu0 0.0
        %953 = vmatpush2.msra.mxu0 0.0
        %954 = vmatprep.subr.mxu0 0.0
        %955 = vmatpush2.msra.mxu0 0.0
        %956 = vmatprep.subr.mxu0 0.0
        %957 = vmatpush2.msra.mxu0 0.0
        %958 = vmatprep.subr.mxu0 0.0
        %959 = vmatpush2.msra.mxu0 0.0
        %960 = vmatprep.subr.mxu0 0.0
        %961 = vmatpush2.msra.mxu0 0.0
        %962 = vmatprep.subr.mxu0 0.0
        %963 = vmatpush2.msra.mxu0 0.0
        %964 = vmatprep.subr.mxu0 0.0
        %965 = vmatpush2.msra.mxu0 0.0
        %966 = vmatprep.mubr.f32.mxu0 0.0
        %967 = vmatmul.mubr.f32.gmra.mxu0 %v629
        %v968 = vpop.f32.mrf.mxu0
        %v969 = vadd.f32 %v890, %v968
        %v970 = vpop.f32.mrf.mxu0
        %v971 = vadd.f32 %v894, %v970
        %972 = vdwg.mxu0
        %973 = vmatprep.subr.mxu0 0.0
        %974 = vmatpush1.msra.mxu0 %v726
        %975 = vmatprep.subr.mxu0 0.0
        %976 = vmatpush1.msra.mxu0 %v723
        %977 = vmatprep.subr.mxu0 0.0
        %978 = vmatpush1.msra.mxu0 %v720
        %979 = vmatprep.subr.mxu0 0.0
        %980 = vmatpush1.msra.mxu0 %v717
        %981 = vmatprep.subr.mxu0 0.0
        %982 = vmatpush1.msra.mxu0 %v714
        %983 = vmatprep.subr.mxu0 0.0
        %984 = vmatpush1.msra.mxu0 %v711
        %985 = vmatprep.subr.mxu0 0.0
        %986 = vmatpush1.msra.mxu0 %v708
        %987 = vmatprep.subr.mxu0 0.0
        %988 = vmatpush1.msra.mxu0 %v705
        %989 = vmatprep.subr.mxu0 0.0
        %990 = vmatpush1.msra.mxu0 %v702
        %991 = vmatprep.subr.mxu0 0.0
        %992 = vmatpush1.msra.mxu0 %v699
        %993 = vmatprep.subr.mxu0 0.0
        %994 = vmatpush1.msra.mxu0 %v696
        %995 = vmatprep.subr.mxu0 0.0
        %996 = vmatpush1.msra.mxu0 %v693
        %997 = vmatprep.subr.mxu0 0.0
        %998 = vmatpush1.msra.mxu0 %v690
        %999 = vmatprep.subr.mxu0 0.0
        %1000 = vmatpush1.msra.mxu0 %v687
        %1001 = vmatprep.subr.mxu0 0.0
        %1002 = vmatpush1.msra.mxu0 %v684
        %1003 = vmatprep.subr.mxu0 0.0
        %1004 = vmatpush1.msra.mxu0 %v681
        %1005 = vmatprep.subr.mxu0 0.0
        %1006 = vmatpush2.msra.mxu0 0.0
        %1007 = vmatprep.subr.mxu0 0.0
        %1008 = vmatpush2.msra.mxu0 0.0
        %1009 = vmatprep.subr.mxu0 0.0
        %1010 = vmatpush2.msra.mxu0 0.0
        %1011 = vmatprep.subr.mxu0 0.0
        %1012 = vmatpush2.msra.mxu0 0.0
        %1013 = vmatprep.subr.mxu0 0.0
        %1014 = vmatpush2.msra.mxu0 0.0
        %1015 = vmatprep.subr.mxu0 0.0
        %1016 = vmatpush2.msra.mxu0 0.0
        %1017 = vmatprep.subr.mxu0 0.0
        %1018 = vmatpush2.msra.mxu0 0.0
        %1019 = vmatprep.subr.mxu0 0.0
        %1020 = vmatpush2.msra.mxu0 0.0
        %1021 = vmatprep.subr.mxu0 0.0
        %1022 = vmatpush2.msra.mxu0 0.0
        %1023 = vmatprep.subr.mxu0 0.0
        %1024 = vmatpush2.msra.mxu0 0.0
        %1025 = vmatprep.subr.mxu0 0.0
        %1026 = vmatpush2.msra.mxu0 0.0
        %1027 = vmatprep.subr.mxu0 0.0
        %1028 = vmatpush2.msra.mxu0 0.0
        %1029 = vmatprep.subr.mxu0 0.0
        %1030 = vmatpush2.msra.mxu0 0.0
        %1031 = vmatprep.subr.mxu0 0.0
        %1032 = vmatpush2.msra.mxu0 0.0
        %1033 = vmatprep.subr.mxu0 0.0
        %1034 = vmatpush2.msra.mxu0 0.0
        %1035 = vmatprep.subr.mxu0 0.0
        %1036 = vmatpush2.msra.mxu0 0.0
        %1037 = vmatprep.mubr.f32.mxu0 0.0
        %1038 = vmatmul.mubr.f32.gmra.mxu0 %v629
        %v1039 = vpop.f32.mrf.mxu0
        %v1040 = vadd.f32 %v898, %v1039
        %v1041 = vpop.f32.mrf.mxu0
        %1042 = vdwg.mxu0
        %v1043 = vadd.f32 %v811, %v969
        %v1044 = vxor.u32 %v1043, 2147483648
        %v1045 = vmul.f32 %v1044, 1.442695
        %v1046 = vpow.pop %v1045
        %v1047 = vadd.f32 %v1046, 1.0
        %v1048 = vrcp.pop %v1047
        %v1049 = vmul.f32 1.0, %v1048
        %v1050 = vadd.f32 %v813, %v971
        %v1051 = vxor.u32 %v1050, 2147483648
        %v1052 = vmul.f32 %v1051, 1.442695
        %v1053 = vpow.pop %v1052
        %v1054 = vadd.f32 %v1053, 1.0
        %v1055 = vrcp.pop %v1054
        %v1056 = vmul.f32 1.0, %v1055
        %v1057 = vmul.f32 %v1049, %v1040
        %v1058 = vadd.f32 %v882, %v1057
        %v1059 = vtanh.pop %v1058
        %v1060 = vsub.f32 1.0, %v1056
        %v1061 = vmul.f32 %v1060, %v1059
        %v1062 = vmul.f32 %v1056, %v629
        %v1063 = vadd.f32 %v1061, %v1062
        %v1064 = vsel %vm625, 1, 0
        %1065 = vset.pattern.permute.xlu0 0
        %1066 = vperm.xlu0 %1065, %v1064
        %v1067 = vpop.permute.xlu0 %1066
        %vm1068 = vcmp.eq.s32.totalorder %v1067, 1
        %v1069 = vsel %vm1068, %v1063, %v629
        %1070 = vst [vmem:[#allocation2] sm:$0xff] %v1069
        %v1071 = vsel %vm1068, %v1063, 0.0
        %1072 = vst [vmem:[%s596] sm:$0xff] %v1071
        %v1073 = vld [vmem:[#allocation3] sm:$0xff]
        %v1074 = vld [vmem:[%s533] sm:$0xff]
        %v1075 = vld [vmem:[#allocation12] sm:$0xff]
        %v1076 = vld [vmem:[#allocation12 + $0x8] sm:$0xff]
        %v1077 = vld [vmem:[#allocation12 + $0x10] sm:$0xff]
        %v1078 = vld [vmem:[#allocation12 + $0x18] sm:$0xff]
        %v1079 = vld [vmem:[#allocation12 + $0x20] sm:$0xff]
        %v1080 = vld [vmem:[#allocation12 + $0x28] sm:$0xff]
        %v1081 = vld [vmem:[#allocation12 + $0x30] sm:$0xff]
        %v1082 = vld [vmem:[#allocation12 + $0x38] sm:$0xff]
        %v1083 = vld [vmem:[#allocation12 + $0x40] sm:$0xff]
        %v1084 = vld [vmem:[#allocation12 + $0x48] sm:$0xff]
        %v1085 = vld [vmem:[#allocation12 + $0x50] sm:$0xff]
        %v1086 = vld [vmem:[#allocation12 + $0x58] sm:$0xff]
        %v1087 = vld [vmem:[#allocation12 + $0x60] sm:$0xff]
        %v1088 = vld [vmem:[#allocation12 + $0x68] sm:$0xff]
        %v1089 = vld [vmem:[#allocation12 + $0x70] sm:$0xff]
        %v1090 = vld [vmem:[#allocation12 + $0x78] sm:$0xff]
        %v1091 = vld [vmem:[#allocation12 + $0x80] sm:$0xff]
        %v1092 = vld [vmem:[#allocation12 + $0x88] sm:$0xff]
        %v1093 = vld [vmem:[#allocation12 + $0x90] sm:$0xff]
        %v1094 = vld [vmem:[#allocation12 + $0x98] sm:$0xff]
        %v1095 = vld [vmem:[#allocation12 + $0xa0] sm:$0xff]
        %v1096 = vld [vmem:[#allocation12 + $0xa8] sm:$0xff]
        %v1097 = vld [vmem:[#allocation12 + $0xb0] sm:$0xff]
        %v1098 = vld [vmem:[#allocation12 + $0xb8] sm:$0xff]
        %v1099 = vld [vmem:[#allocation12 + $0xc0] sm:$0xff]
        %v1100 = vld [vmem:[#allocation12 + $0xc8] sm:$0xff]
        %v1101 = vld [vmem:[#allocation12 + $0xd0] sm:$0xff]
        %v1102 = vld [vmem:[#allocation12 + $0xd8] sm:$0xff]
        %v1103 = vld [vmem:[#allocation12 + $0xe0] sm:$0xff]
        %v1104 = vld [vmem:[#allocation12 + $0xe8] sm:$0xff]
        %v1105 = vld [vmem:[#allocation12 + $0xf0] sm:$0xff]
        %v1106 = vld [vmem:[#allocation12 + $0xf8] sm:$0xff]
        %v1107 = vld [vmem:[#allocation12 + $0x100] sm:$0xff]
        %v1108 = vld [vmem:[#allocation12 + $0x108] sm:$0xff]
        %v1109 = vld [vmem:[#allocation12 + $0x110] sm:$0xff]
        %v1110 = vld [vmem:[#allocation12 + $0x118] sm:$0xff]
        %v1111 = vld [vmem:[#allocation12 + $0x120] sm:$0xff]
        %v1112 = vld [vmem:[#allocation12 + $0x128] sm:$0xff]
        %v1113 = vld [vmem:[#allocation12 + $0x130] sm:$0xff]
        %v1114 = vld [vmem:[#allocation12 + $0x138] sm:$0xff]
        %v1115 = vld [vmem:[#allocation12 + $0x140] sm:$0xff]
        %v1116 = vld [vmem:[#allocation12 + $0x148] sm:$0xff]
        %v1117 = vld [vmem:[#allocation12 + $0x150] sm:$0xff]
        %v1118 = vld [vmem:[#allocation12 + $0x158] sm:$0xff]
        %v1119 = vld [vmem:[#allocation12 + $0x160] sm:$0xff]
        %v1120 = vld [vmem:[#allocation12 + $0x168] sm:$0xff]
        %v1121 = vld [vmem:[#allocation12 + $0x170] sm:$0xff]
        %v1122 = vld [vmem:[#allocation12 + $0x178] sm:$0xff]
        %v1123 = vld [vmem:[#allocation13] sm:$0xff]
        %v1124 = vld [vmem:[#allocation13 + $0x8] sm:$0xff]
        %v1125 = vld [vmem:[#allocation13 + $0x10] sm:$0xff]
        %v1126 = vld [vmem:[#allocation13 + $0x18] sm:$0xff]
        %v1127 = vld [vmem:[#allocation13 + $0x20] sm:$0xff]
        %v1128 = vld [vmem:[#allocation13 + $0x28] sm:$0xff]
        %v1129 = vld [vmem:[#allocation13 + $0x30] sm:$0xff]
        %v1130 = vld [vmem:[#allocation13 + $0x38] sm:$0xff]
        %v1131 = vld [vmem:[#allocation13 + $0x40] sm:$0xff]
        %v1132 = vld [vmem:[#allocation13 + $0x48] sm:$0xff]
        %v1133 = vld [vmem:[#allocation13 + $0x50] sm:$0xff]
        %v1134 = vld [vmem:[#allocation13 + $0x58] sm:$0xff]
        %v1135 = vld [vmem:[#allocation13 + $0x60] sm:$0xff]
        %v1136 = vld [vmem:[#allocation13 + $0x68] sm:$0xff]
        %v1137 = vld [vmem:[#allocation13 + $0x70] sm:$0xff]
        %v1138 = vld [vmem:[#allocation13 + $0x78] sm:$0xff]
        %v1139 = vld [vmem:[#allocation13 + $0x80] sm:$0xff]
        %v1140 = vld [vmem:[#allocation13 + $0x88] sm:$0xff]
        %v1141 = vld [vmem:[#allocation13 + $0x90] sm:$0xff]
        %v1142 = vld [vmem:[#allocation13 + $0x98] sm:$0xff]
        %v1143 = vld [vmem:[#allocation13 + $0xa0] sm:$0xff]
        %v1144 = vld [vmem:[#allocation13 + $0xa8] sm:$0xff]
        %v1145 = vld [vmem:[#allocation13 + $0xb0] sm:$0xff]
        %v1146 = vld [vmem:[#allocation13 + $0xb8] sm:$0xff]
        %v1147 = vld [vmem:[#allocation13 + $0xc0] sm:$0xff]
        %v1148 = vld [vmem:[#allocation13 + $0xc8] sm:$0xff]
        %v1149 = vld [vmem:[#allocation13 + $0xd0] sm:$0xff]
        %v1150 = vld [vmem:[#allocation13 + $0xd8] sm:$0xff]
        %v1151 = vld [vmem:[#allocation13 + $0xe0] sm:$0xff]
        %v1152 = vld [vmem:[#allocation13 + $0xe8] sm:$0xff]
        %v1153 = vld [vmem:[#allocation13 + $0xf0] sm:$0xff]
        %v1154 = vld [vmem:[#allocation13 + $0xf8] sm:$0xff]
        %v1155 = vld [vmem:[#allocation13 + $0x100] sm:$0xff]
        %v1156 = vld [vmem:[#allocation13 + $0x108] sm:$0xff]
        %v1157 = vld [vmem:[#allocation13 + $0x110] sm:$0xff]
        %v1158 = vld [vmem:[#allocation13 + $0x118] sm:$0xff]
        %v1159 = vld [vmem:[#allocation13 + $0x120] sm:$0xff]
        %v1160 = vld [vmem:[#allocation13 + $0x128] sm:$0xff]
        %v1161 = vld [vmem:[#allocation13 + $0x130] sm:$0xff]
        %v1162 = vld [vmem:[#allocation13 + $0x138] sm:$0xff]
        %v1163 = vld [vmem:[#allocation13 + $0x140] sm:$0xff]
        %v1164 = vld [vmem:[#allocation13 + $0x148] sm:$0xff]
        %v1165 = vld [vmem:[#allocation13 + $0x150] sm:$0xff]
        %v1166 = vld [vmem:[#allocation13 + $0x158] sm:$0xff]
        %v1167 = vld [vmem:[#allocation13 + $0x160] sm:$0xff]
        %v1168 = vld [vmem:[#allocation13 + $0x168] sm:$0xff]
        %v1169 = vld [vmem:[#allocation13 + $0x170] sm:$0xff]
        %v1170 = vld [vmem:[#allocation13 + $0x178] sm:$0xff]
        %v1171 = vld [vmem:[%s9] sm:$0x7]
        %v1173 = vlaneseq
        %v1174 = vshrl.u32 %v1173, 7
        %v1175 = vsub.s32 0, %v1174
        %v1176 = vrot.slane %v1171, %v1175
        %v1177 = vlaneseq
        %v1178 = vshrl.u32 %v1177, 7
        %v1179 = vsub.s32 1, %v1178
        %v1180 = vrot.slane %v1171, %v1179
        %v1181 = vlaneseq
        %v1182 = vshrl.u32 %v1181, 7
        %v1183 = vsub.s32 2, %v1182
        %v1184 = vrot.slane %v1171, %v1183
        %1188 = vmatprep.subr.mxu0 %v1121
        %1189 = vmatpush1.msra.mxu0 %v1120
        %1190 = vmatprep.subr.mxu0 %v1118
        %1191 = vmatpush1.msra.mxu0 %v1117
        %1192 = vmatprep.subr.mxu0 %v1115
        %1193 = vmatpush1.msra.mxu0 %v1114
        %1194 = vmatprep.subr.mxu0 %v1112
        %1195 = vmatpush1.msra.mxu0 %v1111
        %1196 = vmatprep.subr.mxu0 %v1109
        %1197 = vmatpush1.msra.mxu0 %v1108
        %1198 = vmatprep.subr.mxu0 %v1106
        %1199 = vmatpush1.msra.mxu0 %v1105
        %1200 = vmatprep.subr.mxu0 %v1103
        %1201 = vmatpush1.msra.mxu0 %v1102
        %1202 = vmatprep.subr.mxu0 %v1100
        %1203 = vmatpush1.msra.mxu0 %v1099
        %1204 = vmatprep.subr.mxu0 %v1097
        %1205 = vmatpush1.msra.mxu0 %v1096
        %1206 = vmatprep.subr.mxu0 %v1094
        %1207 = vmatpush1.msra.mxu0 %v1093
        %1208 = vmatprep.subr.mxu0 %v1091
        %1209 = vmatpush1.msra.mxu0 %v1090
        %1210 = vmatprep.subr.mxu0 %v1088
        %1211 = vmatpush1.msra.mxu0 %v1087
        %1212 = vmatprep.subr.mxu0 %v1085
        %1213 = vmatpush1.msra.mxu0 %v1084
        %1214 = vmatprep.subr.mxu0 %v1082
        %1215 = vmatpush1.msra.mxu0 %v1081
        %1216 = vmatprep.subr.mxu0 %v1079
        %1217 = vmatpush1.msra.mxu0 %v1078
        %1218 = vmatprep.subr.mxu0 %v1076
        %1219 = vmatpush1.msra.mxu0 %v1075
        %1220 = vmatprep.subr.mxu0 0.0
        %1221 = vmatpush2.msra.mxu0 0.0
        %1222 = vmatprep.subr.mxu0 0.0
        %1223 = vmatpush2.msra.mxu0 0.0
        %1224 = vmatprep.subr.mxu0 0.0
        %1225 = vmatpush2.msra.mxu0 0.0
        %1226 = vmatprep.subr.mxu0 0.0
        %1227 = vmatpush2.msra.mxu0 0.0
        %1228 = vmatprep.subr.mxu0 0.0
        %1229 = vmatpush2.msra.mxu0 0.0
        %1230 = vmatprep.subr.mxu0 0.0
        %1231 = vmatpush2.msra.mxu0 0.0
        %1232 = vmatprep.subr.mxu0 0.0
        %1233 = vmatpush2.msra.mxu0 0.0
        %1234 = vmatprep.subr.mxu0 0.0
        %1235 = vmatpush2.msra.mxu0 0.0
        %1236 = vmatprep.subr.mxu0 0.0
        %1237 = vmatpush2.msra.mxu0 0.0
        %1238 = vmatprep.subr.mxu0 0.0
        %1239 = vmatpush2.msra.mxu0 0.0
        %1240 = vmatprep.subr.mxu0 0.0
        %1241 = vmatpush2.msra.mxu0 0.0
        %1242 = vmatprep.subr.mxu0 0.0
        %1243 = vmatpush2.msra.mxu0 0.0
        %1244 = vmatprep.subr.mxu0 0.0
        %1245 = vmatpush2.msra.mxu0 0.0
        %1246 = vmatprep.subr.mxu0 0.0
        %1247 = vmatpush2.msra.mxu0 0.0
        %1248 = vmatprep.subr.mxu0 0.0
        %1249 = vmatpush2.msra.mxu0 0.0
        %1250 = vmatprep.subr.mxu0 0.0
        %1251 = vmatpush2.msra.mxu0 0.0
        %1252 = vmatprep.mubr.f32.mxu0 0.0
        %1253 = vmatmul.mubr.f32.gmra.mxu0 %v1074
        %v1254 = vpop.f32.mrf.mxu0
        %v1255 = vadd.f32 %v1176, %v1254
        %v1256 = vpop.f32.mrf.mxu0
        %v1257 = vadd.f32 %v1180, %v1256
        %1258 = vdwg.mxu0
        %1259 = vmatprep.subr.mxu0 0.0
        %1260 = vmatpush1.msra.mxu0 %v1122
        %1261 = vmatprep.subr.mxu0 0.0
        %1262 = vmatpush1.msra.mxu0 %v1119
        %1263 = vmatprep.subr.mxu0 0.0
        %1264 = vmatpush1.msra.mxu0 %v1116
        %1265 = vmatprep.subr.mxu0 0.0
        %1266 = vmatpush1.msra.mxu0 %v1113
        %1267 = vmatprep.subr.mxu0 0.0
        %1268 = vmatpush1.msra.mxu0 %v1110
        %1269 = vmatprep.subr.mxu0 0.0
        %1270 = vmatpush1.msra.mxu0 %v1107
        %1271 = vmatprep.subr.mxu0 0.0
        %1272 = vmatpush1.msra.mxu0 %v1104
        %1273 = vmatprep.subr.mxu0 0.0
        %1274 = vmatpush1.msra.mxu0 %v1101
        %1275 = vmatprep.subr.mxu0 0.0
        %1276 = vmatpush1.msra.mxu0 %v1098
        %1277 = vmatprep.subr.mxu0 0.0
        %1278 = vmatpush1.msra.mxu0 %v1095
        %1279 = vmatprep.subr.mxu0 0.0
        %1280 = vmatpush1.msra.mxu0 %v1092
        %1281 = vmatprep.subr.mxu0 0.0
        %1282 = vmatpush1.msra.mxu0 %v1089
        %1283 = vmatprep.subr.mxu0 0.0
        %1284 = vmatpush1.msra.mxu0 %v1086
        %1285 = vmatprep.subr.mxu0 0.0
        %1286 = vmatpush1.msra.mxu0 %v1083
        %1287 = vmatprep.subr.mxu0 0.0
        %1288 = vmatpush1.msra.mxu0 %v1080
        %1289 = vmatprep.subr.mxu0 0.0
        %1290 = vmatpush1.msra.mxu0 %v1077
        %1291 = vmatprep.subr.mxu0 0.0
        %1292 = vmatpush2.msra.mxu0 0.0
        %1293 = vmatprep.subr.mxu0 0.0
        %1294 = vmatpush2.msra.mxu0 0.0
        %1295 = vmatprep.subr.mxu0 0.0
        %1296 = vmatpush2.msra.mxu0 0.0
        %1297 = vmatprep.subr.mxu0 0.0
        %1298 = vmatpush2.msra.mxu0 0.0
        %1299 = vmatprep.subr.mxu0 0.0
        %1300 = vmatpush2.msra.mxu0 0.0
        %1301 = vmatprep.subr.mxu0 0.0
        %1302 = vmatpush2.msra.mxu0 0.0
        %1303 = vmatprep.subr.mxu0 0.0
        %1304 = vmatpush2.msra.mxu0 0.0
        %1305 = vmatprep.subr.mxu0 0.0
        %1306 = vmatpush2.msra.mxu0 0.0
        %1307 = vmatprep.subr.mxu0 0.0
        %1308 = vmatpush2.msra.mxu0 0.0
        %1309 = vmatprep.subr.mxu0 0.0
        %1310 = vmatpush2.msra.mxu0 0.0
        %1311 = vmatprep.subr.mxu0 0.0
        %1312 = vmatpush2.msra.mxu0 0.0
        %1313 = vmatprep.subr.mxu0 0.0
        %1314 = vmatpush2.msra.mxu0 0.0
        %1315 = vmatprep.subr.mxu0 0.0
        %1316 = vmatpush2.msra.mxu0 0.0
        %1317 = vmatprep.subr.mxu0 0.0
        %1318 = vmatpush2.msra.mxu0 0.0
        %1319 = vmatprep.subr.mxu0 0.0
        %1320 = vmatpush2.msra.mxu0 0.0
        %1321 = vmatprep.subr.mxu0 0.0
        %1322 = vmatpush2.msra.mxu0 0.0
        %1323 = vmatprep.mubr.f32.mxu0 0.0
        %1324 = vmatmul.mubr.f32.gmra.mxu0 %v1074
        %v1325 = vpop.f32.mrf.mxu0
        %v1326 = vadd.f32 %v1184, %v1325
        %v1327 = vpop.f32.mrf.mxu0
        %1328 = vdwg.mxu0
        %v1329 = vld [vmem:[%s10] sm:$0x7]
        %v1331 = vlaneseq
        %v1332 = vshrl.u32 %v1331, 7
        %v1333 = vsub.s32 0, %v1332
        %v1334 = vrot.slane %v1329, %v1333
        %v1335 = vlaneseq
        %v1336 = vshrl.u32 %v1335, 7
        %v1337 = vsub.s32 1, %v1336
        %v1338 = vrot.slane %v1329, %v1337
        %v1339 = vlaneseq
        %v1340 = vshrl.u32 %v1339, 7
        %v1341 = vsub.s32 2, %v1340
        %v1342 = vrot.slane %v1329, %v1341
        %1346 = vmatprep.subr.mxu0 %v1169
        %1347 = vmatpush1.msra.mxu0 %v1168
        %1348 = vmatprep.subr.mxu0 %v1166
        %1349 = vmatpush1.msra.mxu0 %v1165
        %1350 = vmatprep.subr.mxu0 %v1163
        %1351 = vmatpush1.msra.mxu0 %v1162
        %1352 = vmatprep.subr.mxu0 %v1160
        %1353 = vmatpush1.msra.mxu0 %v1159
        %1354 = vmatprep.subr.mxu0 %v1157
        %1355 = vmatpush1.msra.mxu0 %v1156
        %1356 = vmatprep.subr.mxu0 %v1154
        %1357 = vmatpush1.msra.mxu0 %v1153
        %1358 = vmatprep.subr.mxu0 %v1151
        %1359 = vmatpush1.msra.mxu0 %v1150
        %1360 = vmatprep.subr.mxu0 %v1148
        %1361 = vmatpush1.msra.mxu0 %v1147
        %1362 = vmatprep.subr.mxu0 %v1145
        %1363 = vmatpush1.msra.mxu0 %v1144
        %1364 = vmatprep.subr.mxu0 %v1142
        %1365 = vmatpush1.msra.mxu0 %v1141
        %1366 = vmatprep.subr.mxu0 %v1139
        %1367 = vmatpush1.msra.mxu0 %v1138
        %1368 = vmatprep.subr.mxu0 %v1136
        %1369 = vmatpush1.msra.mxu0 %v1135
        %1370 = vmatprep.subr.mxu0 %v1133
        %1371 = vmatpush1.msra.mxu0 %v1132
        %1372 = vmatprep.subr.mxu0 %v1130
        %1373 = vmatpush1.msra.mxu0 %v1129
        %1374 = vmatprep.subr.mxu0 %v1127
        %1375 = vmatpush1.msra.mxu0 %v1126
        %1376 = vmatprep.subr.mxu0 %v1124
        %1377 = vmatpush1.msra.mxu0 %v1123
        %1378 = vmatprep.subr.mxu0 0.0
        %1379 = vmatpush2.msra.mxu0 0.0
        %1380 = vmatprep.subr.mxu0 0.0
        %1381 = vmatpush2.msra.mxu0 0.0
        %1382 = vmatprep.subr.mxu0 0.0
        %1383 = vmatpush2.msra.mxu0 0.0
        %1384 = vmatprep.subr.mxu0 0.0
        %1385 = vmatpush2.msra.mxu0 0.0
        %1386 = vmatprep.subr.mxu0 0.0
        %1387 = vmatpush2.msra.mxu0 0.0
        %1388 = vmatprep.subr.mxu0 0.0
        %1389 = vmatpush2.msra.mxu0 0.0
        %1390 = vmatprep.subr.mxu0 0.0
        %1391 = vmatpush2.msra.mxu0 0.0
        %1392 = vmatprep.subr.mxu0 0.0
        %1393 = vmatpush2.msra.mxu0 0.0
        %1394 = vmatprep.subr.mxu0 0.0
        %1395 = vmatpush2.msra.mxu0 0.0
        %1396 = vmatprep.subr.mxu0 0.0
        %1397 = vmatpush2.msra.mxu0 0.0
        %1398 = vmatprep.subr.mxu0 0.0
        %1399 = vmatpush2.msra.mxu0 0.0
        %1400 = vmatprep.subr.mxu0 0.0
        %1401 = vmatpush2.msra.mxu0 0.0
        %1402 = vmatprep.subr.mxu0 0.0
        %1403 = vmatpush2.msra.mxu0 0.0
        %1404 = vmatprep.subr.mxu0 0.0
        %1405 = vmatpush2.msra.mxu0 0.0
        %1406 = vmatprep.subr.mxu0 0.0
        %1407 = vmatpush2.msra.mxu0 0.0
        %1408 = vmatprep.subr.mxu0 0.0
        %1409 = vmatpush2.msra.mxu0 0.0
        %1410 = vmatprep.mubr.f32.mxu0 0.0
        %1411 = vmatmul.mubr.f32.gmra.mxu0 %v1073
        %v1412 = vpop.f32.mrf.mxu0
        %v1413 = vadd.f32 %v1334, %v1412
        %v1414 = vpop.f32.mrf.mxu0
        %v1415 = vadd.f32 %v1338, %v1414
        %1416 = vdwg.mxu0
        %1417 = vmatprep.subr.mxu0 0.0
        %1418 = vmatpush1.msra.mxu0 %v1170
        %1419 = vmatprep.subr.mxu0 0.0
        %1420 = vmatpush1.msra.mxu0 %v1167
        %1421 = vmatprep.subr.mxu0 0.0
        %1422 = vmatpush1.msra.mxu0 %v1164
        %1423 = vmatprep.subr.mxu0 0.0
        %1424 = vmatpush1.msra.mxu0 %v1161
        %1425 = vmatprep.subr.mxu0 0.0
        %1426 = vmatpush1.msra.mxu0 %v1158
        %1427 = vmatprep.subr.mxu0 0.0
        %1428 = vmatpush1.msra.mxu0 %v1155
        %1429 = vmatprep.subr.mxu0 0.0
        %1430 = vmatpush1.msra.mxu0 %v1152
        %1431 = vmatprep.subr.mxu0 0.0
        %1432 = vmatpush1.msra.mxu0 %v1149
        %1433 = vmatprep.subr.mxu0 0.0
        %1434 = vmatpush1.msra.mxu0 %v1146
        %1435 = vmatprep.subr.mxu0 0.0
        %1436 = vmatpush1.msra.mxu0 %v1143
        %1437 = vmatprep.subr.mxu0 0.0
        %1438 = vmatpush1.msra.mxu0 %v1140
        %1439 = vmatprep.subr.mxu0 0.0
        %1440 = vmatpush1.msra.mxu0 %v1137
        %1441 = vmatprep.subr.mxu0 0.0
        %1442 = vmatpush1.msra.mxu0 %v1134
        %1443 = vmatprep.subr.mxu0 0.0
        %1444 = vmatpush1.msra.mxu0 %v1131
        %1445 = vmatprep.subr.mxu0 0.0
        %1446 = vmatpush1.msra.mxu0 %v1128
        %1447 = vmatprep.subr.mxu0 0.0
        %1448 = vmatpush1.msra.mxu0 %v1125
        %1449 = vmatprep.subr.mxu0 0.0
        %1450 = vmatpush2.msra.mxu0 0.0
        %1451 = vmatprep.subr.mxu0 0.0
        %1452 = vmatpush2.msra.mxu0 0.0
        %1453 = vmatprep.subr.mxu0 0.0
        %1454 = vmatpush2.msra.mxu0 0.0
        %1455 = vmatprep.subr.mxu0 0.0
        %1456 = vmatpush2.msra.mxu0 0.0
        %1457 = vmatprep.subr.mxu0 0.0
        %1458 = vmatpush2.msra.mxu0 0.0
        %1459 = vmatprep.subr.mxu0 0.0
        %1460 = vmatpush2.msra.mxu0 0.0
        %1461 = vmatprep.subr.mxu0 0.0
        %1462 = vmatpush2.msra.mxu0 0.0
        %1463 = vmatprep.subr.mxu0 0.0
        %1464 = vmatpush2.msra.mxu0 0.0
        %1465 = vmatprep.subr.mxu0 0.0
        %1466 = vmatpush2.msra.mxu0 0.0
        %1467 = vmatprep.subr.mxu0 0.0
        %1468 = vmatpush2.msra.mxu0 0.0
        %1469 = vmatprep.subr.mxu0 0.0
        %1470 = vmatpush2.msra.mxu0 0.0
        %1471 = vmatprep.subr.mxu0 0.0
        %1472 = vmatpush2.msra.mxu0 0.0
        %1473 = vmatprep.subr.mxu0 0.0
        %1474 = vmatpush2.msra.mxu0 0.0
        %1475 = vmatprep.subr.mxu0 0.0
        %1476 = vmatpush2.msra.mxu0 0.0
        %1477 = vmatprep.subr.mxu0 0.0
        %1478 = vmatpush2.msra.mxu0 0.0
        %1479 = vmatprep.subr.mxu0 0.0
        %1480 = vmatpush2.msra.mxu0 0.0
        %1481 = vmatprep.mubr.f32.mxu0 0.0
        %1482 = vmatmul.mubr.f32.gmra.mxu0 %v1073
        %v1483 = vpop.f32.mrf.mxu0
        %v1484 = vadd.f32 %v1342, %v1483
        %v1485 = vpop.f32.mrf.mxu0
        %1486 = vdwg.mxu0
        %v1487 = vadd.f32 %v1255, %v1413
        %v1488 = vxor.u32 %v1487, 2147483648
        %v1489 = vmul.f32 %v1488, 1.442695
        %v1490 = vpow.pop %v1489
        %v1491 = vadd.f32 %v1490, 1.0
        %v1492 = vrcp.pop %v1491
        %v1493 = vmul.f32 1.0, %v1492
        %v1494 = vadd.f32 %v1257, %v1415
        %v1495 = vxor.u32 %v1494, 2147483648
        %v1496 = vmul.f32 %v1495, 1.442695
        %v1497 = vpow.pop %v1496
        %v1498 = vadd.f32 %v1497, 1.0
        %v1499 = vrcp.pop %v1498
        %v1500 = vmul.f32 1.0, %v1499
        %v1501 = vmul.f32 %v1493, %v1484
        %v1502 = vadd.f32 %v1326, %v1501
        %v1503 = vtanh.pop %v1502
        %v1504 = vsub.f32 1.0, %v1500
        %v1505 = vmul.f32 %v1504, %v1503
        %v1506 = vmul.f32 %v1500, %v1073
        %v1507 = vadd.f32 %v1505, %v1506
        %v1508 = vsel %vm628, 1, 0
        %1509 = vset.pattern.permute.xlu0 0
        %1510 = vperm.xlu0 %1509, %v1508
        %v1511 = vpop.permute.xlu0 %1510
        %vm1512 = vcmp.eq.s32.totalorder %v1511, 1
        %v1513 = vsel %vm1512, %v1507, %v1073
        %1514 = vst [vmem:[#allocation3] sm:$0xff] %v1513
        %v1515 = vsel %vm1512, %v1507, 0.0
        %1516 = vst [vmem:[%s603] sm:$0xff] %v1515
        %p1517 = scmp.eq.s32.totalorder %s44, 8
        // Predicated region
        $region93: #{tpu_custom_call.1} parent=63 // pred_check
          %p1518 = pneg %p1517
        $region94: #{tpu_custom_call.1} parent=63 // pred_check_branch
          %1520 = sbr.rel (%p1518) target = $region96
        $region95: #{tpu_custom_call.1} parent=63 // pred_region
          %v1521 = vld [vmem:[#allocation2] sm:$0xff]
          %v1522 = vld [vmem:[#allocation3] sm:$0xff]
          %v1523 = vadd.f32 %v1521, %v1522
          %1524 = vst [vmem:[%s610] sm:$0xff] %v1523
        $region96: #{tpu_custom_call.1} parent=63 // pred_fallthru
          _
        %s1525 = sand.u32 %s313, 1
        %s1526 = scalar_lea.sflag [#allocation6], %s1525
        %s1527 = sand.u32 %s313, 1
        %s1528 = smul.addr %s1527, 8
        %s1529 = scalar_lea.vmem [#allocation15], %s1528
        %s1530 = sand.u32 %s39, 1
        %s1531 = scalar_lea.sflag [#allocation17], %s1530
        %s1532 = sand.u32 %s343, 1
        %s1533 = smul.addr %s1532, 8
        %s1534 = scalar_lea.vmem [#allocation16], %s1533
        %s1535 = sand.u32 %s39, 1
        %s1536 = scalar_lea.sflag [#allocation17], %s1535
        %s1537 = sand.u32 %s369, 1
        %s1538 = smul.addr %s1537, 8
        %s1539 = scalar_lea.vmem [#allocation18], %s1538
        // Predicated region
        $region97: #{tpu_custom_call.1} parent=63 // pred_check
          %p1540 = pneg %p323
        $region98: #{tpu_custom_call.1} parent=63 // pred_check_branch
          %1542 = sbr.rel (%p1540) target = $region100
        $region99: #{tpu_custom_call.1} parent=63 // pred_region
          %s1544 = ssub.s32 128, 128
          %1545 = vsyncadd %s1526, %s1544
          %s1546 = smul.addr %s44, 2
          %s1547 = sadd.s32 %s43, %s1546
          %s1548 = smul.addr %s1547, 128
          %s1549 = scalar_lea.hbm %s11, %s1548
          %s1551 = sshll.u32 %s1529, 4
          %s1552 = int_to_ptr.vmem [resolvable:$true] %s1551
          %1554 = dma.vmem_to_hbm [thread:$0]  %s1552, 128, %s1549, %s1526
        $region100: #{tpu_custom_call.1} parent=63 // pred_fallthru
          _
        // Predicated region
        $region101: #{tpu_custom_call.1} parent=63 // pred_check
          %p1555 = pneg %p353
        $region102: #{tpu_custom_call.1} parent=63 // pred_check_branch
          %1557 = sbr.rel (%p1555) target = $region104
        $region103: #{tpu_custom_call.1} parent=63 // pred_region
          %s1558 = ssub.s32 8, %s44
          %s1560 = ssub.s32 128, 128
          %1561 = vsyncadd %s1531, %s1560
          %s1562 = smul.addr %s1558, 2
          %s1563 = sadd.s32 %s43, %s1562
          %s1564 = smul.addr %s1563, 128
          %s1565 = scalar_lea.hbm %s12, %s1564
          %s1567 = sshll.u32 %s1534, 4
          %s1568 = int_to_ptr.vmem [resolvable:$true] %s1567
          %1570 = dma.vmem_to_hbm [thread:$0]  %s1568, 128, %s1565, %s1531
        $region104: #{tpu_custom_call.1} parent=63 // pred_fallthru
          _
        // Predicated region
        $region105: #{tpu_custom_call.1} parent=63 // pred_check
          %p1571 = pneg %p379
        $region106: #{tpu_custom_call.1} parent=63 // pred_check_branch
          %1573 = sbr.rel (%p1571) target = $region108
        $region107: #{tpu_custom_call.1} parent=63 // pred_region
          %s1575 = ssub.s32 128, 128
          %1576 = vsyncadd %s1536, %s1575
          %s1577 = smul.addr %s43, 128
          %s1578 = scalar_lea.hbm %s13, %s1577
          %s1580 = sshll.u32 %s1539, 4
          %s1581 = int_to_ptr.vmem [resolvable:$true] %s1580
          %1583 = dma.vmem_to_hbm [thread:$0]  %s1581, 128, %s1578, %s1536
        $region108: #{tpu_custom_call.1} parent=63 // pred_fallthru
          _
      $region64: #{tpu_custom_call.1} parent=5 // pred_fallthru
        _
      %p1584 = scmp.le.s32.totalorder 2, %s34
      // Predicated region
      $region109: #{tpu_custom_call.1} parent=5 // pred_check
        %p1585 = pneg %p1584
      $region110: #{tpu_custom_call.1} parent=5 // pred_check_branch
        %1587 = sbr.rel (%p1585) target = $region112
      $region111: #{tpu_custom_call.1} parent=5 // pred_region
        %s1588 = ssub.s32 %s34, 2
        // Predicated region
        $region113: #{tpu_custom_call.1} parent=111 // pred_check
          %p1589 = pneg %p329
        $region114: #{tpu_custom_call.1} parent=111 // pred_check_branch
          %1591 = sbr.rel (%p1589) target = $region116
        $region115: #{tpu_custom_call.1} parent=111 // pred_region
          %s1592 = sand.u32 %s314, 1
          %s1593 = scalar_lea.sflag [#allocation6], %s1592
          %s1594 = sand.u32 %s314, 1
          %s1595 = smul.addr %s1594, 8
          %s1596 = scalar_lea.vmem [#allocation15], %s1595
          %1597 = dma.done %s1593, 128
        $region116: #{tpu_custom_call.1} parent=111 // pred_fallthru
          _
        // Predicated region
        $region117: #{tpu_custom_call.1} parent=111 // pred_check
          %p1598 = pneg %p359
        $region118: #{tpu_custom_call.1} parent=111 // pred_check_branch
          %1600 = sbr.rel (%p1598) target = $region120
        $region119: #{tpu_custom_call.1} parent=111 // pred_region
          %s1601 = sand.u32 %s40, 1
          %s1602 = scalar_lea.sflag [#allocation17], %s1601
          %s1603 = sand.u32 %s344, 1
          %s1604 = smul.addr %s1603, 8
          %s1605 = scalar_lea.vmem [#allocation16], %s1604
          %1606 = dma.done %s1602, 128
        $region120: #{tpu_custom_call.1} parent=111 // pred_fallthru
          _
        // Predicated region
        $region121: #{tpu_custom_call.1} parent=111 // pred_check
          %p1607 = pneg %p385
        $region122: #{tpu_custom_call.1} parent=111 // pred_check_branch
          %1609 = sbr.rel (%p1607) target = $region124
        $region123: #{tpu_custom_call.1} parent=111 // pred_region
          %s1610 = sand.u32 %s40, 1
          %s1611 = scalar_lea.sflag [#allocation17], %s1610
          %s1612 = sand.u32 %s370, 1
          %s1613 = smul.addr %s1612, 8
          %s1614 = scalar_lea.vmem [#allocation18], %s1613
          %1615 = dma.done %s1611, 128
        $region124: #{tpu_custom_call.1} parent=111 // pred_fallthru
          _
      $region112: #{tpu_custom_call.1} parent=5 // pred_fallthru
        _
    $region6: #{tpu_custom_call.1} parent=1 // loop_footer
      %s38 = sadd.s32 1, %s34
    $region7: #{tpu_custom_call.1} parent=1 // loop_footer_branch
      %33 = sbr.rel target = $region3
    $region8: #{tpu_custom_call.1} parent=1 // loop_exit
      _
    %1616 = vsyncpa [#allocation5], 1
    %s1617 = scalar_lea.sflag [#allocation5], 1
    %1618 = vsyncpa %s1617, 1
    %1619 = vsyncpa [#allocation8], 1
    %s1620 = scalar_lea.sflag [#allocation8], 1
    %1621 = vsyncpa %s1620, 1
    %1622 = vsyncpa [#allocation11], 1
    %1623 = vsyncpa [#allocation14], 1
    %1624 = vsyncpa [#allocation6], 1
    %s1625 = scalar_lea.sflag [#allocation6], 1
    %1626 = vsyncpa %s1625, 1
    %1627 = vsyncpa [#allocation17], 1
    %s1628 = scalar_lea.sflag [#allocation17], 1
    %1629 = vsyncpa %s1628, 1

</llo_original>
